<compile_context>
chip_gen: v5e
topology: v5e:2x2
jax: 0.10.0
libtpu: 0.0.40
codegen_flags: <defaults>
</compile_context>

<pallas_src>
import jax
import jax.numpy as jnp
import numpy as np
from jax.experimental import pallas as pl
from jax.experimental.pallas import tpu as pltpu

F32 = jnp.float32
BF16 = jnp.bfloat16
LANE = 128          # lane-dense padding for hidden / class dims
TM = 512            # edge-row tile (sweep 256-1024)
NUM_SPLITS = 2      # leading "parallel" grid axis -> both TensorCores on v7x


def _ceil(n, m):
    return (n + m - 1) // m * m


# ----------------------------- Pallas kernels -------------------------------

def _edge_accum_kernel(ef_ref, hsrc_ref, dst_ref,
                       ew1_ref, eb1_ref, ew2_ref, eb2_ref,
                       pw1a_ref, pw1b_ref, pb1_ref, pw2_ref, pb2_ref,
                       part_ref):
    c = pl.program_id(0)        # core-split index ("parallel")
    j = pl.program_id(1)        # edge-tile index within split (reduction, "arbitrary")

    @pl.when(j == 0)
    def _():
        part_ref[...] = jnp.zeros_like(part_ref)

    # --- input_layer_e: e = relu(ef @ W1e + b1e) @ W2e + b2e (true-K first matmul) ---
    z = jnp.dot(ef_ref[...], ew1_ref[...], preferred_element_type=jnp.float32) + eb1_ref[...]
    z = jnp.maximum(z, 0.0)
    e = jnp.dot(z.astype(BF16), ew2_ref[...], preferred_element_type=jnp.float32) + eb2_ref[...]

    # --- message_func: m = phi(cat(e, h_src)); torch.cat folded into split weights ---
    z = (jnp.dot(e.astype(BF16), pw1a_ref[...], preferred_element_type=jnp.float32)
         + jnp.dot(hsrc_ref[...], pw1b_ref[...], preferred_element_type=jnp.float32)
         + pb1_ref[...])
    z = jnp.maximum(z, 0.0)
    msg = jnp.dot(z.astype(BF16), pw2_ref[...], preferred_element_type=jnp.float32) + pb2_ref[...]

    # --- fn.sum(m -> h): segment-sum via in-VMEM bf16 one-hot (0/1 exact), f32 accum ---
    tm = ef_ref.shape[0]
    n_dst_pad = part_ref.shape[0]
    t = c * pl.num_programs(1) + j                     # global edge-tile index
    dst = dst_ref[pl.ds(t, 1), :]                      # (1, tm); resident, no per-step DMA
    onehot = (jax.lax.broadcasted_iota(jnp.int32, (n_dst_pad, tm), 0)
              == dst).astype(BF16)                     # padded edges carry an OOB sentinel
    part_ref[...] += jnp.dot(onehot, msg.astype(BF16),
                             preferred_element_type=jnp.float32)


def _node_update_kernel(part_ref, selfh_ref, norm_ref,
                        pw1b_ref, pb1_ref, pw2_ref, pb2_ref,
                        nw1a_ref, nw1b_ref, nb1_ref, nw2_ref, nb2_ref,
                        fcw_ref, fcb_ref,
                        h_out_ref, logit_ref):
    # combine the per-core partial sums
    agg = part_ref[0]
    for s in range(1, NUM_SPLITS):
        agg = agg + part_ref[s]

    # self_h = phi(cat(zeros(H), h[layer_nid])): the zero half folds away -> only W1b used.
    sz = jnp.dot(selfh_ref[...], pw1b_ref[...], preferred_element_type=jnp.float32) + pb1_ref[...]
    sz = jnp.maximum(sz, 0.0)
    self_h = jnp.dot(sz.astype(BF16), pw2_ref[...],
                     preferred_element_type=jnp.float32) + pb2_ref[...]

    # NodeUpdate (test=True): h = (agg - self_h) * norm ; node_layer(cat(h, self_h))
    hh = (agg - self_h) * norm_ref[...]                # norm is (n_dst_pad, 1), broadcasts
    nz = (jnp.dot(hh.astype(BF16), nw1a_ref[...], preferred_element_type=jnp.float32)
          + jnp.dot(self_h.astype(BF16), nw1b_ref[...], preferred_element_type=jnp.float32)
          + nb1_ref[...])
    nz = jnp.maximum(nz, 0.0)
    h_new = jnp.dot(nz.astype(BF16), nw2_ref[...],
                    preferred_element_type=jnp.float32) + nb2_ref[...]
    h_out_ref[...] = h_new

    # final fc fused into the epilogue
    logit_ref[...] = jnp.dot(h_new.astype(BF16), fcw_ref[...],
                             preferred_element_type=jnp.float32) + fcb_ref[...]


# ----------------------------- wrapper ---------------------------------------

def edgeprop_block(ef_p, hsrc_p, dst_p, selfh_p, norm_p, ew, pw, nw, fc, *, tm=TM):
    e_pad, fe = ef_p.shape
    fh = hsrc_p.shape[1]
    n_dst_pad = selfh_p.shape[0]
    hp = ew["w2t"].shape[1]                       # 128 (lane-dense hidden)
    tiles_per_split = e_pad // (NUM_SPLITS * tm)
    assert tiles_per_split * NUM_SPLITS * tm == e_pad and tiles_per_split >= 1

    def edge_tile_map(c, j):
        return (c * tiles_per_split + j, 0)

    acc_weights = (ew["w1t"], ew["b1"], ew["w2t"], ew["b2"],
                   pw["w1at"], pw["w1bt"], pw["b1"], pw["w2t"], pw["b2"])

    in_specs = ([pl.BlockSpec((tm, fe), edge_tile_map),          # edge feats (true width)
                 pl.BlockSpec((tm, fh), edge_tile_map),          # gathered h[src] (true width)
                 pl.BlockSpec(dst_p.shape, lambda c, j: (0, 0))]  # dst ids, VMEM-resident
                + [pl.BlockSpec(w.shape, lambda c, j: (0, 0)) for w in acc_weights])

    grid_spec = pltpu.PrefetchScalarGridSpec(
        num_scalar_prefetch=0,
        grid=(NUM_SPLITS, tiles_per_split),
        in_specs=in_specs,
        # per-core partial accumulator, resident across the reduction axis
        out_specs=pl.BlockSpec((None, n_dst_pad, hp), lambda c, j: (c, 0, 0)),
    )

    partial = pl.pallas_call(
        _edge_accum_kernel,
        grid_spec=grid_spec,
        out_shape=jax.ShapeDtypeStruct((NUM_SPLITS, n_dst_pad, hp), F32),
        compiler_params=pltpu.CompilerParams(
            dimension_semantics=("parallel", "arbitrary"),
            vmem_limit_bytes=32 * 1024 * 1024),
    )(ef_p, hsrc_p, dst_p, *acc_weights)

    # tiny whole-array epilogue: combine partials + self_h + NodeUpdate + fc
    h_out, logits = pl.pallas_call(
        _node_update_kernel,
        out_shape=(jax.ShapeDtypeStruct((n_dst_pad, hp), F32),
                   jax.ShapeDtypeStruct((n_dst_pad, hp), F32)),
    )(partial, selfh_p, norm_p,
      pw["w1bt"], pw["b1"], pw["w2t"], pw["b2"],
      nw["w1at"], nw["w1bt"], nw["b1"], nw["w2t"], nw["b2"],
      fc["wt"], fc["b"])
    return h_out, logits


# ----------------------------- parameter / data prep -------------------------

def _pad2(a, rows, cols):
    return jnp.zeros((rows, cols), a.dtype).at[: a.shape[0], : a.shape[1]].set(a)


def _pad_rows(a, rows):
    return jnp.zeros((rows,) + a.shape[1:], a.dtype).at[: a.shape[0]].set(a)


def _prep_mat(w):          # K is a 128-lane intermediate -> pad to (128, 128)
    return _pad2(w, LANE, LANE).astype(BF16)


def _prep_mat_k(w):        # K is a true feature width -> pad rows to mult-of-8 only
    return _pad2(w, _ceil(w.shape[0], 8), LANE).astype(BF16)


def _prep_bias(b):
    return _pad2(b.reshape(1, -1), 1, LANE).astype(F32)


def prepare_params(params, num_hidden):
    """One-time weight prep: transpose, split the cat-weights, pad, bf16 (hoisted)."""
    H = num_hidden
    prep = {
        "edge": {
            "w1t": _prep_mat_k(params["edge"]["w1"].T),   # (ceil8(edge_in_dim), 128)
            "b1": _prep_bias(params["edge"]["b1"]),
            "w2t": _prep_mat(params["edge"]["w2"].T),
            "b2": _prep_bias(params["edge"]["b2"]),
        },
        "phi": [], "node": [],
        "fc": {"wt": _prep_mat(params["fc"]["w"].T), "b": _prep_bias(params["fc"]["b"])},
    }
    for phi, nl in zip(params["phi"], params["node"]):
        prep["phi"].append({
            "w1at": _prep_mat(phi["w1"][:, :H].T),        # acts on e (128-lane intermediate)
            "w1bt": _prep_mat_k(phi["w1"][:, H:].T),      # acts on h_src (true width)
            "b1": _prep_bias(phi["b1"]),
            "w2t": _prep_mat(phi["w2"].T), "b2": _prep_bias(phi["b2"]),
        })
        prep["node"].append({
            "w1at": _prep_mat(nl["w1"][:, :H].T),
            "w1bt": _prep_mat(nl["w1"][:, H:].T),
            "b1": _prep_bias(nl["b1"]),
            "w2t": _prep_mat(nl["w2"].T), "b2": _prep_bias(nl["b2"]),
        })
    return prep


# ----------------------------- model ------------------------------------------

def init_onelayer(key, in_dim, out_dim):
    k1, k2, k3, k4 = jax.random.split(key, 4)
    return {
        "w1": jax.random.normal(k1, (out_dim, in_dim), F32) * 0.1,
        "b1": jax.random.normal(k2, (out_dim,), F32) * 0.1,
        "w2": jax.random.normal(k3, (out_dim, out_dim), F32) * 0.1,
        "b2": jax.random.normal(k4, (out_dim,), F32) * 0.1,
    }


def init_params(key, num_layers, in_dim, edge_in_dim, num_hidden, num_classes):
    keys = jax.random.split(key, 2 + 2 * num_layers + 1)
    params = {"edge": init_onelayer(keys[0], edge_in_dim, num_hidden), "phi": [], "node": []}
    params["phi"].append(init_onelayer(keys[1], in_dim + num_hidden, num_hidden))
    params["node"].append(init_onelayer(keys[2], 2 * num_hidden, num_hidden))
    for i in range(1, num_layers):
        params["phi"].append(init_onelayer(keys[1 + 2 * i], 2 * num_hidden, num_hidden))
        params["node"].append(init_onelayer(keys[2 + 2 * i], 2 * num_hidden, num_hidden))
    kfc_w, kfc_b = jax.random.split(keys[-1], 2)
    params["fc"] = {
        "w": jax.random.normal(kfc_w, (num_classes, num_hidden), F32)
             * (0.1 * np.sqrt(2.0 / (num_hidden + num_classes))),
        "b": jax.random.normal(kfc_b, (num_classes,), F32) * 0.1,
    }
    return params


def forward_pallas(prep, node_features, blocks, num_hidden, num_classes):
    """Mirrors MiniBatchEdgePropInfer.forward (inference, feat_drop=0)."""
    H = num_hidden
    h = node_features.astype(BF16)                  # true width (in_dim), no lane padding

    h_full = logits_full = None
    n_dst = node_features.shape[0]
    for i, blk in enumerate(blocks):
        E = blk["edge_feat"].shape[0]
        # at least one tile per core split -> zero-edge blocks are still well-defined
        e_pad = max(1, -(-E // (NUM_SPLITS * TM))) * NUM_SPLITS * TM
        n_dst = blk["norm"].shape[0]
        n_dst_pad = _ceil(n_dst, 8)

        fe_pad = prep["edge"]["w1t"].shape[0]       # ceil8(edge_in_dim)
        fh_pad = prep["phi"][i]["w1bt"].shape[0]    # ceil8(src feature width)

        ef_p = _pad2(blk["edge_feat"], e_pad, fe_pad).astype(BF16)
        hsrc_p = _pad2(h[blk["src"]], e_pad, fh_pad)        # TODO(synk): in-kernel DMA gather
        selfh_p = _pad2(h[blk["layer_nid"]], n_dst_pad, fh_pad)
        # padded edges get an out-of-range dst sentinel so they contribute nothing
        dst_flat = jnp.full((e_pad,), n_dst_pad, jnp.int32).at[:E].set(
            blk["dst"].astype(jnp.int32))
        dst_p = dst_flat.reshape(e_pad // TM, TM)
        norm_p = _pad_rows(blk["norm"].astype(F32), n_dst_pad)   # (n_dst_pad, 1)

        h_full, logits_full = edgeprop_block(
            ef_p, hsrc_p, dst_p, selfh_p, norm_p,
            prep["edge"], prep["phi"][i], prep["node"][i], prep["fc"])
        h = h_full[:n_dst, :H].astype(BF16)          # padded lanes are exactly zero

    embeddings = h_full[:n_dst, :H]
    logits = logits_full[:n_dst, :num_classes]
    return logits, embeddings


# ----------------------------- pure-JAX reference ----------------------------

def _ref_onelayer(x, p):
    z = jnp.maximum(x @ p["w1"].T + p["b1"], 0.0)
    return z @ p["w2"].T + p["b2"]


def forward_ref(params, node_features, blocks, num_hidden):
    H = num_hidden
    h = node_features
    for i, blk in enumerate(blocks):
        e = _ref_onelayer(blk["edge_feat"], params["edge"])
        phi = params["phi"][i]
        self_feat = h[blk["layer_nid"]]
        self_h = _ref_onelayer(
            jnp.concatenate([jnp.zeros((self_feat.shape[0], H), F32), self_feat], axis=1), phi)
        msg = _ref_onelayer(jnp.concatenate([e, h[blk["src"]]], axis=1), phi)
        n_dst = blk["norm"].shape[0]
        agg = jax.ops.segment_sum(msg, blk["dst"], num_segments=n_dst)
        hh = (agg - self_h) * blk["norm"]
        h = _ref_onelayer(jnp.concatenate([hh, self_h], axis=1), params["node"][i])
    return h @ params["fc"]["w"].T + params["fc"]["b"], h


# ----------------------------- main ------------------------------------------

if __name__ == "__main__":
    num_layers = 2
    in_dim = 8
    edge_in_dim = 6
    num_hidden = 16
    num_classes = 5

    # synthetic NodeFlow: layer sizes 20 -> 16 -> 8
    N0, N1, N2 = 20, 16, 8
    E0, E1 = 160, 96

    root = jax.random.PRNGKey(0)
    kp, kf, ke0, ke1, ks0, kd0, ks1, kd1, kn1, kn2, kl0, kl1 = jax.random.split(root, 12)

    params = init_params(kp, num_layers, in_dim, edge_in_dim, num_hidden, num_classes)
    prep = prepare_params(params, num_hidden)   # hoisted weight transpose/split/pad/bf16

    node_features = jax.random.normal(kf, (N0, in_dim), F32)
    blocks = [
        {   # block 0: layer0 -> layer1
            "edge_feat": jax.random.normal(ke0, (E0, edge_in_dim), F32),
            "src": jax.random.randint(ks0, (E0,), 0, N0),
            "dst": jax.random.randint(kd0, (E0,), 0, N1),
            "layer_nid": jax.random.permutation(kl0, N0)[:N1],
            "norm": jax.random.uniform(kn1, (N1, 1), F32, 0.1, 1.0),
        },
        {   # block 1: layer1 -> layer2
            "edge_feat": jax.random.normal(ke1, (E1, edge_in_dim), F32),
            "src": jax.random.randint(ks1, (E1,), 0, N1),
            "dst": jax.random.randint(kd1, (E1,), 0, N2),
            "layer_nid": jax.random.permutation(kl1, N1)[:N2],
            "norm": jax.random.uniform(kn2, (N2, 1), F32, 0.1, 1.0),
        },
    ]

    logits, emb = forward_pallas(prep, node_features, blocks, num_hidden, num_classes)
    logits = jax.block_until_ready(logits)
    emb = jax.block_until_ready(emb)

    ref_logits, ref_emb = forward_ref(params, node_features, blocks, num_hidden)
    # Kernels use bf16 matmul operands (incl. the bf16 one-hot segment-sum) with f32
    # accumulation, vs the pure-f32 reference.
    np.testing.assert_allclose(np.asarray(emb), np.asarray(ref_emb), rtol=4e-2, atol=4e-2)
    np.testing.assert_allclose(np.asarray(logits), np.asarray(ref_logits), rtol=4e-2, atol=4e-2)

    assert logits.shape == (N2, num_classes) and emb.shape == (N2, num_hidden)
    print("KERNEL_OK")
</pallas_src>

<mosaic_0001>
module attributes {stable_mosaic.version = 11 : i64} {
  func.func @_edge_accum_kernel(%arg0: i32, %arg1: i32, %arg2: memref<512x8xbf16, #tpu.memory_space<vmem>>, %arg3: memref<512x8xbf16, #tpu.memory_space<vmem>>, %arg4: memref<2x512xi32, #tpu.memory_space<vmem>>, %arg5: memref<8x128xbf16, #tpu.memory_space<vmem>>, %arg6: memref<1x128xf32, #tpu.memory_space<vmem>>, %arg7: memref<128x128xbf16, #tpu.memory_space<vmem>>, %arg8: memref<1x128xf32, #tpu.memory_space<vmem>>, %arg9: memref<128x128xbf16, #tpu.memory_space<vmem>>, %arg10: memref<8x128xbf16, #tpu.memory_space<vmem>>, %arg11: memref<1x128xf32, #tpu.memory_space<vmem>>, %arg12: memref<128x128xbf16, #tpu.memory_space<vmem>>, %arg13: memref<1x128xf32, #tpu.memory_space<vmem>>, %arg14: memref<1x16x128xf32, #tpu.memory_space<vmem>>) attributes {dimension_semantics = [#tpu.dimension_semantics<parallel>, #tpu.dimension_semantics<arbitrary>], iteration_bounds = array<i64: 2, 1>, scalar_prefetch = 0 : i64, scratch_operands = 0 : i64, tpu.core_type = #tpu.core_type<tc>, window_params = [{transform_indices = @transform_0, window_bounds = array<i64: 512, 8>}, {transform_indices = @transform_1, window_bounds = array<i64: 512, 8>}, {pipeline_mode = #tpu.pipeline_mode<synchronous>, transform_indices = @transform_2, window_bounds = array<i64: 2, 512>}, {pipeline_mode = #tpu.pipeline_mode<synchronous>, transform_indices = @transform_3, window_bounds = array<i64: 8, 128>}, {pipeline_mode = #tpu.pipeline_mode<synchronous>, transform_indices = @transform_4, window_bounds = array<i64: 1, 128>}, {pipeline_mode = #tpu.pipeline_mode<synchronous>, transform_indices = @transform_5, window_bounds = array<i64: 128, 128>}, {pipeline_mode = #tpu.pipeline_mode<synchronous>, transform_indices = @transform_6, window_bounds = array<i64: 1, 128>}, {pipeline_mode = #tpu.pipeline_mode<synchronous>, transform_indices = @transform_7, window_bounds = array<i64: 128, 128>}, {pipeline_mode = #tpu.pipeline_mode<synchronous>, transform_indices = @transform_8, window_bounds = array<i64: 8, 128>}, {pipeline_mode = #tpu.pipeline_mode<synchronous>, transform_indices = @transform_9, window_bounds = array<i64: 1, 128>}, {pipeline_mode = #tpu.pipeline_mode<synchronous>, transform_indices = @transform_10, window_bounds = array<i64: 128, 128>}, {pipeline_mode = #tpu.pipeline_mode<synchronous>, transform_indices = @transform_11, window_bounds = array<i64: 1, 128>}, {transform_indices = @transform_12, window_bounds = array<i64: 1, 16, 128>}]} {
    %c0_i32 = arith.constant 0 : i32
    %0 = arith.cmpi eq, %arg1, %c0_i32 : i32
    %1 = arith.extui %0 : i1 to i32
    %c0_i32_0 = arith.constant 0 : i32
    %2 = arith.cmpi ne, %1, %c0_i32_0 : i32
    scf.if %2 {
      %cst_36 = arith.constant 0.000000e+00 : f32
      %53 = vector.broadcast %cst_36 : f32 to vector<16x128xf32>
      %c0_37 = arith.constant 0 : index
      %c0_38 = arith.constant 0 : index
      %c0_39 = arith.constant 0 : index
      %54 = vector.load %arg14[%c0_37, %c0_38, %c0_39] : memref<1x16x128xf32, #tpu.memory_space<vmem>>, vector<1x16x128xf32>
      %55 = vector.shape_cast %54 : vector<1x16x128xf32> to vector<16x128xf32>
      %56 = vector.shape_cast %53 : vector<16x128xf32> to vector<1x16x128xf32>
      tpu.vector_store %arg14[%c0_37, %c0_38, %c0_39], %56 {strides = array<i32>} : memref<1x16x128xf32, #tpu.memory_space<vmem>>, vector<1x16x128xf32>,
    } else {
    }
    %c0 = arith.constant 0 : index
    %c0_1 = arith.constant 0 : index
    %3 = vector.load %arg2[%c0, %c0_1] : memref<512x8xbf16, #tpu.memory_space<vmem>>, vector<512x8xbf16>
    %c0_2 = arith.constant 0 : index
    %c0_3 = arith.constant 0 : index
    %4 = vector.load %arg5[%c0_2, %c0_3] : memref<8x128xbf16, #tpu.memory_space<vmem>>, vector<8x128xbf16>
    %cst = arith.constant dense<0.000000e+00> : vector<512x128xf32>
    %5 = tpu.matmul %3, %4, %cst {dimension_numbers = #tpu.dot_dimension_numbers<[1], [0], [0], [1], [0, 0, 1, 1], [], []>} : vector<512x8xbf16>, vector<8x128xbf16>, vector<512x128xf32> -> vector<512x128xf32>
    %c0_4 = arith.constant 0 : index
    %c0_5 = arith.constant 0 : index
    %6 = vector.load %arg6[%c0_4, %c0_5] : memref<1x128xf32, #tpu.memory_space<vmem>>, vector<1x128xf32>
    %7 = vector.broadcast %6 : vector<1x128xf32> to vector<512x128xf32>
    %8 = arith.addf %5, %7 : vector<512x128xf32>
    %cst_6 = arith.constant 0.000000e+00 : f32
    %9 = vector.broadcast %cst_6 : f32 to vector<512x128xf32>
    %10 = arith.maximumf %8, %9 : vector<512x128xf32>
    %11 = arith.truncf %10 : vector<512x128xf32> to vector<512x128xbf16>
    %c0_7 = arith.constant 0 : index
    %c0_8 = arith.constant 0 : index
    %12 = vector.load %arg7[%c0_7, %c0_8] : memref<128x128xbf16, #tpu.memory_space<vmem>>, vector<128x128xbf16>
    %cst_9 = arith.constant dense<0.000000e+00> : vector<512x128xf32>
    %13 = tpu.matmul %11, %12, %cst_9 {dimension_numbers = #tpu.dot_dimension_numbers<[1], [0], [0], [1], [0, 0, 1, 1], [], []>} : vector<512x128xbf16>, vector<128x128xbf16>, vector<512x128xf32> -> vector<512x128xf32>
    %c0_10 = arith.constant 0 : index
    %c0_11 = arith.constant 0 : index
    %14 = vector.load %arg8[%c0_10, %c0_11] : memref<1x128xf32, #tpu.memory_space<vmem>>, vector<1x128xf32>
    %15 = vector.broadcast %14 : vector<1x128xf32> to vector<512x128xf32>
    %16 = arith.addf %13, %15 : vector<512x128xf32>
    %17 = arith.truncf %16 : vector<512x128xf32> to vector<512x128xbf16>
    %c0_12 = arith.constant 0 : index
    %c0_13 = arith.constant 0 : index
    %18 = vector.load %arg9[%c0_12, %c0_13] : memref<128x128xbf16, #tpu.memory_space<vmem>>, vector<128x128xbf16>
    %cst_14 = arith.constant dense<0.000000e+00> : vector<512x128xf32>
    %19 = tpu.matmul %17, %18, %cst_14 {dimension_numbers = #tpu.dot_dimension_numbers<[1], [0], [0], [1], [0, 0, 1, 1], [], []>} : vector<512x128xbf16>, vector<128x128xbf16>, vector<512x128xf32> -> vector<512x128xf32>
    %c0_15 = arith.constant 0 : index
    %c0_16 = arith.constant 0 : index
    %20 = vector.load %arg3[%c0_15, %c0_16] : memref<512x8xbf16, #tpu.memory_space<vmem>>, vector<512x8xbf16>
    %c0_17 = arith.constant 0 : index
    %c0_18 = arith.constant 0 : index
    %21 = vector.load %arg10[%c0_17, %c0_18] : memref<8x128xbf16, #tpu.memory_space<vmem>>, vector<8x128xbf16>
    %cst_19 = arith.constant dense<0.000000e+00> : vector<512x128xf32>
    %22 = tpu.matmul %20, %21, %cst_19 {dimension_numbers = #tpu.dot_dimension_numbers<[1], [0], [0], [1], [0, 0, 1, 1], [], []>} : vector<512x8xbf16>, vector<8x128xbf16>, vector<512x128xf32> -> vector<512x128xf32>
    %23 = arith.addf %19, %22 : vector<512x128xf32>
    %c0_20 = arith.constant 0 : index
    %c0_21 = arith.constant 0 : index
    %24 = vector.load %arg11[%c0_20, %c0_21] : memref<1x128xf32, #tpu.memory_space<vmem>>, vector<1x128xf32>
    %25 = vector.broadcast %24 : vector<1x128xf32> to vector<512x128xf32>
    %26 = arith.addf %23, %25 : vector<512x128xf32>
    %cst_22 = arith.constant 0.000000e+00 : f32
    %27 = vector.broadcast %cst_22 : f32 to vector<512x128xf32>
    %28 = arith.maximumf %26, %27 : vector<512x128xf32>
    %29 = arith.truncf %28 : vector<512x128xf32> to vector<512x128xbf16>
    %c0_23 = arith.constant 0 : index
    %c0_24 = arith.constant 0 : index
    %30 = vector.load %arg12[%c0_23, %c0_24] : memref<128x128xbf16, #tpu.memory_space<vmem>>, vector<128x128xbf16>
    %cst_25 = arith.constant dense<0.000000e+00> : vector<512x128xf32>
    %31 = tpu.matmul %29, %30, %cst_25 {dimension_numbers = #tpu.dot_dimension_numbers<[1], [0], [0], [1], [0, 0, 1, 1], [], []>} : vector<512x128xbf16>, vector<128x128xbf16>, vector<512x128xf32> -> vector<512x128xf32>
    %c0_26 = arith.constant 0 : index
    %c0_27 = arith.constant 0 : index
    %32 = vector.load %arg13[%c0_26, %c0_27] : memref<1x128xf32, #tpu.memory_space<vmem>>, vector<1x128xf32>
    %33 = vector.broadcast %32 : vector<1x128xf32> to vector<512x128xf32>
    %34 = arith.addf %31, %33 : vector<512x128xf32>
    %c1_i32 = arith.constant 1 : i32
    %35 = arith.muli %arg0, %c1_i32 : i32
    %36 = arith.addi %35, %arg1 : i32
    %37 = arith.index_cast %36 : i32 to index
    %c0_28 = arith.constant 0 : index
    %38 = vector.load %arg4[%37, %c0_28] : memref<2x512xi32, #tpu.memory_space<vmem>>, vector<1x512xi32>
    %39 = tpu.iota {dimensions = array<i32: 0>} : vector<16x512xi32>
    %40 = vector.broadcast %38 : vector<1x512xi32> to vector<16x512xi32>
    %41 = arith.cmpi eq, %39, %40 : vector<16x512xi32>
    %42 = arith.extui %41 : vector<16x512xi1> to vector<16x512xi32>
    %43 = arith.sitofp %42 : vector<16x512xi32> to vector<16x512xf32>
    %44 = arith.truncf %43 : vector<16x512xf32> to vector<16x512xbf16>
    %c0_29 = arith.constant 0 : index
    %c0_30 = arith.constant 0 : index
    %c0_31 = arith.constant 0 : index
    %45 = vector.load %arg14[%c0_29, %c0_30, %c0_31] : memref<1x16x128xf32, #tpu.memory_space<vmem>>, vector<1x16x128xf32>
    %46 = vector.shape_cast %45 : vector<1x16x128xf32> to vector<16x128xf32>
    %47 = arith.truncf %34 : vector<512x128xf32> to vector<512x128xbf16>
    %cst_32 = arith.constant dense<0.000000e+00> : vector<16x128xf32>
    %48 = tpu.matmul %44, %47, %cst_32 {dimension_numbers = #tpu.dot_dimension_numbers<[1], [0], [0], [1], [0, 0, 1, 1], [], []>} : vector<16x512xbf16>, vector<512x128xbf16>, vector<16x128xf32> -> vector<16x128xf32>
    %49 = arith.addf %46, %48 : vector<16x128xf32>
    %c0_33 = arith.constant 0 : index
    %c0_34 = arith.constant 0 : index
    %c0_35 = arith.constant 0 : index
    %50 = vector.load %arg14[%c0_33, %c0_34, %c0_35] : memref<1x16x128xf32, #tpu.memory_space<vmem>>, vector<1x16x128xf32>
    %51 = vector.shape_cast %50 : vector<1x16x128xf32> to vector<16x128xf32>
    %52 = vector.shape_cast %49 : vector<16x128xf32> to vector<1x16x128xf32>
    tpu.vector_store %arg14[%c0_33, %c0_34, %c0_35], %52 {strides = array<i32>} : memref<1x16x128xf32, #tpu.memory_space<vmem>>, vector<1x16x128xf32>,
    return
  }
  func.func @transform_0(%arg0: i32, %arg1: i32) -> (i32, i32) {
    %c1_i32 = arith.constant 1 : i32
    %0 = arith.muli %arg0, %c1_i32 : i32
    %1 = arith.addi %0, %arg1 : i32
    %c0_i32 = arith.constant 0 : i32
    %c0_i32_0 = arith.constant 0 : i32
    return %1, %c0_i32 : i32, i32
  }
  func.func @transform_1(%arg0: i32, %arg1: i32) -> (i32, i32) {
    %c1_i32 = arith.constant 1 : i32
    %0 = arith.muli %arg0, %c1_i32 : i32
    %1 = arith.addi %0, %arg1 : i32
    %c0_i32 = arith.constant 0 : i32
    %c0_i32_0 = arith.constant 0 : i32
    return %1, %c0_i32 : i32, i32
  }
  func.func @transform_2(%arg0: i32, %arg1: i32) -> (i32, i32) {
    %c0_i32 = arith.constant 0 : i32
    %c0_i32_0 = arith.constant 0 : i32
    %c0_i32_1 = arith.constant 0 : i32
    return %c0_i32, %c0_i32_0 : i32, i32
  }
  func.func @transform_3(%arg0: i32, %arg1: i32) -> (i32, i32) {
    %c0_i32 = arith.constant 0 : i32
    %c0_i32_0 = arith.constant 0 : i32
    %c0_i32_1 = arith.constant 0 : i32
    return %c0_i32, %c0_i32_0 : i32, i32
  }
  func.func @transform_4(%arg0: i32, %arg1: i32) -> (i32, i32) {
    %c0_i32 = arith.constant 0 : i32
    %c0_i32_0 = arith.constant 0 : i32
    %c0_i32_1 = arith.constant 0 : i32
    return %c0_i32, %c0_i32_0 : i32, i32
  }
  func.func @transform_5(%arg0: i32, %arg1: i32) -> (i32, i32) {
    %c0_i32 = arith.constant 0 : i32
    %c0_i32_0 = arith.constant 0 : i32
    %c0_i32_1 = arith.constant 0 : i32
    return %c0_i32, %c0_i32_0 : i32, i32
  }
  func.func @transform_6(%arg0: i32, %arg1: i32) -> (i32, i32) {
    %c0_i32 = arith.constant 0 : i32
    %c0_i32_0 = arith.constant 0 : i32
    %c0_i32_1 = arith.constant 0 : i32
    return %c0_i32, %c0_i32_0 : i32, i32
  }
  func.func @transform_7(%arg0: i32, %arg1: i32) -> (i32, i32) {
    %c0_i32 = arith.constant 0 : i32
    %c0_i32_0 = arith.constant 0 : i32
    %c0_i32_1 = arith.constant 0 : i32
    return %c0_i32, %c0_i32_0 : i32, i32
  }
  func.func @transform_8(%arg0: i32, %arg1: i32) -> (i32, i32) {
    %c0_i32 = arith.constant 0 : i32
    %c0_i32_0 = arith.constant 0 : i32
    %c0_i32_1 = arith.constant 0 : i32
    return %c0_i32, %c0_i32_0 : i32, i32
  }
  func.func @transform_9(%arg0: i32, %arg1: i32) -> (i32, i32) {
    %c0_i32 = arith.constant 0 : i32
    %c0_i32_0 = arith.constant 0 : i32
    %c0_i32_1 = arith.constant 0 : i32
    return %c0_i32, %c0_i32_0 : i32, i32
  }
  func.func @transform_10(%arg0: i32, %arg1: i32) -> (i32, i32) {
    %c0_i32 = arith.constant 0 : i32
    %c0_i32_0 = arith.constant 0 : i32
    %c0_i32_1 = arith.constant 0 : i32
    return %c0_i32, %c0_i32_0 : i32, i32
  }
  func.func @transform_11(%arg0: i32, %arg1: i32) -> (i32, i32) {
    %c0_i32 = arith.constant 0 : i32
    %c0_i32_0 = arith.constant 0 : i32
    %c0_i32_1 = arith.constant 0 : i32
    return %c0_i32, %c0_i32_0 : i32, i32
  }
  func.func @transform_12(%arg0: i32, %arg1: i32) -> (i32, i32, i32) {
    %c0_i32 = arith.constant 0 : i32
    %c0_i32_0 = arith.constant 0 : i32
    %c0_i32_1 = arith.constant 0 : i32
    return %arg0, %c0_i32, %c0_i32_0 : i32, i32, i32
  }
}

</mosaic_0001>

<llo_original>
// kernel: tpu_custom_call.1
$region0: #{tpu_custom_call.1}
  #allocation0 [shape = 'u32[]', space=smem, size = 0x4, offset = 0x4, fixed_abs, tag = 'smem constant byte address 0x4 - core index']
  #allocation1 [shape = 'u32[72,128]{1,0:T(1,128)}', space=vmem, size = 0x9000, scoped, tag = 'internal scratch']
  %s0 = inlined_call_operand.vmem [shape: bf16[1024,8], index: 0, kind: input, shape index: {}]
  %s1 = inlined_call_operand.vmem [shape: bf16[1024,8], index: 1, kind: input, shape index: {}]
  %s2 = inlined_call_operand.vmem [shape: s32[2,512], index: 2, kind: input, shape index: {}]
  %s3 = inlined_call_operand.vmem [shape: bf16[8,128], index: 3, kind: input, shape index: {}]
  %s4 = inlined_call_operand.vmem [shape: f32[1,128], index: 4, kind: input, shape index: {}]
  %s5 = inlined_call_operand.vmem [shape: bf16[128,128], index: 5, kind: input, shape index: {}]
  %s6 = inlined_call_operand.vmem [shape: f32[1,128], index: 6, kind: input, shape index: {}]
  %s7 = inlined_call_operand.vmem [shape: bf16[128,128], index: 7, kind: input, shape index: {}]
  %s8 = inlined_call_operand.vmem [shape: bf16[8,128], index: 8, kind: input, shape index: {}]
  %s9 = inlined_call_operand.vmem [shape: f32[1,128], index: 9, kind: input, shape index: {}]
  %s10 = inlined_call_operand.vmem [shape: bf16[128,128], index: 10, kind: input, shape index: {}]
  %s11 = inlined_call_operand.vmem [shape: f32[1,128], index: 11, kind: input, shape index: {}]
  %s12 = inlined_call_operand.hbm [shape: f32[2,16,128], index: 12, kind: output, shape index: {}]
  %s13 = sld [smem:[#allocation0]]
  $region85: #{tpu_custom_call.1} parent=0
    _
  %s15 = ssub.s32 1, %s13
  %s16 = scalar_select 0, %s15, %s13
  $region1: #{tpu_custom_call.1} parent=0
    #allocation2 [shape = 'u8[16384]{0}', space=vmem, size = 0x4000, scoped, tag = 'output window, operand 0']
    #allocation3 [shape = 's32[2]{0}', space=sflag, size = 0x8, scoped, tag = 'scoped memory for tpu_custom_call.1']
    %17 = vsyncpa [#allocation3], 0
    %s18 = scalar_lea.sflag [#allocation3], 1
    %19 = vsyncpa %s18, 0
    loop: start=0, step=1, limit=4
    $region2: #{tpu_custom_call.1} parent=1 // loop_pre_header
      _
    $region3: #{tpu_custom_call.1} parent=1 // loop_header
      %s21 = sphi 0, %s25
      %p22 = scmp.ge.s32.totalorder %s21, 4
      %s28 = sphi 0, %s40
      %s29 = sphi 0, %s36
      %s30 = sphi 0, %s28
      %s31 = sphi 0, %s29
      %s32 = sphi 0, %s30
      %s33 = sphi 0, %s31
      %s45 = sphi 0, %s47
      %s48 = sphi 0, %s45
      %s49 = sphi 0, %s48
      %s65 = sphi 0, %s49
      %s73 = sphi 0, %s75
      %s76 = sphi 0, %s73
      %s77 = sphi 0, %s76
      %s93 = sphi 0, %s77
      %s97 = sphi 0, %s97
      %s99 = sphi 0, %s97
      %s100 = sphi 0, %s99
      %s114 = sphi 0, %s100
      %s118 = sphi 0, %s118
      %s120 = sphi 0, %s118
      %s121 = sphi 0, %s120
      %s135 = sphi 0, %s121
      %s139 = sphi 0, %s139
      %s141 = sphi 0, %s139
      %s142 = sphi 0, %s141
      %s156 = sphi 0, %s142
      %s160 = sphi 0, %s160
      %s162 = sphi 0, %s160
      %s163 = sphi 0, %s162
      %s177 = sphi 0, %s163
      %s181 = sphi 0, %s181
      %s183 = sphi 0, %s181
      %s184 = sphi 0, %s183
      %s198 = sphi 0, %s184
      %s202 = sphi 0, %s202
      %s204 = sphi 0, %s202
      %s205 = sphi 0, %s204
      %s219 = sphi 0, %s205
      %s223 = sphi 0, %s223
      %s225 = sphi 0, %s223
      %s226 = sphi 0, %s225
      %s240 = sphi 0, %s226
      %s244 = sphi 0, %s244
      %s246 = sphi 0, %s244
      %s247 = sphi 0, %s246
      %s261 = sphi 0, %s247
      %s265 = sphi 0, %s265
      %s267 = sphi 0, %s265
      %s268 = sphi 0, %s267
      %s282 = sphi 0, %s268
      %s286 = sphi 0, %s286
      %s288 = sphi 0, %s286
      %s289 = sphi 0, %s288
      %s303 = sphi 0, %s289
      %s309 = sphi 0, %s311
      %s312 = sphi 0, %s309
      %s313 = sphi 0, %s312
      %s329 = sphi 0, %s313
    $region4: #{tpu_custom_call.1} parent=1 // loop_header_branch
      %24 = sbr.rel (%p22) target = $region8
    $region5: #{tpu_custom_call.1} parent=1 // loop_body
      %s26 = ssub.s32 %s21, 1
      %s27 = ssub.s32 %s21, 2
      %s34 = sadd.s32 1, %s29
      %p35 = scmp.ge.s32.totalorder %s34, 1
      %s36 = scalar_select %p35, 0, %s34
      %s37 = sadd.s32 1, %s28
      %s38 = scalar_select %p35, %s37, %s28
      %p39 = scmp.ge.s32.totalorder %s38, 2
      %s40 = scalar_select %p39, 0, %s38
      %s41 = sadd.s32 %s28, %s29
      %s42 = sadd.s32 %s40, %s36
      %s43 = ssub.s32 %s41, %s42
      %p44 = scmp.eq.s32.totalorder %s43, 0
      %s46 = sadd.s32 %s45, 1
      %s47 = scalar_select %p44, %s45, %s46
      %p50 = pneg %p44
      %p51 = scmp.eq.s32.totalorder %s21, 1
      %p52 = por %p50, %p51
      %p53 = scmp.ne.s32.totalorder %s45, %s48
      %p54 = scmp.eq.s32.totalorder %s21, 0
      %p55 = por %p53, %p54
      %p56 = scmp.ne.s32.totalorder %s45, %s48
      %p57 = scmp.eq.s32.totalorder %s26, 1
      %p58 = por %p56, %p57
      %p59 = scmp.ne.s32.totalorder %s48, %s49
      %p60 = scmp.eq.s32.totalorder %s26, 0
      %p61 = por %p59, %p60
      %p62 = scmp.ne.s32.totalorder %s48, %s49
      %p63 = scmp.eq.s32.totalorder %s27, 1
      %p64 = por %p62, %p63
      %p66 = scmp.ne.s32.totalorder %s49, %s65
      %p67 = scmp.eq.s32.totalorder %s27, 0
      %p68 = por %p66, %p67
      %s69 = sadd.s32 %s28, %s29
      %s70 = sadd.s32 %s40, %s36
      %s71 = ssub.s32 %s69, %s70
      %p72 = scmp.eq.s32.totalorder %s71, 0
      %s74 = sadd.s32 %s73, 1
      %s75 = scalar_select %p72, %s73, %s74
      %p78 = pneg %p72
      %p79 = scmp.eq.s32.totalorder %s21, 1
      %p80 = por %p78, %p79
      %p81 = scmp.ne.s32.totalorder %s73, %s76
      %p82 = scmp.eq.s32.totalorder %s21, 0
      %p83 = por %p81, %p82
      %p84 = scmp.ne.s32.totalorder %s73, %s76
      %p85 = scmp.eq.s32.totalorder %s26, 1
      %p86 = por %p84, %p85
      %p87 = scmp.ne.s32.totalorder %s76, %s77
      %p88 = scmp.eq.s32.totalorder %s26, 0
      %p89 = por %p87, %p88
      %p90 = scmp.ne.s32.totalorder %s76, %s77
      %p91 = scmp.eq.s32.totalorder %s27, 1
      %p92 = por %p90, %p91
      %p94 = scmp.ne.s32.totalorder %s77, %s93
      %p95 = scmp.eq.s32.totalorder %s27, 0
      %p96 = por %p94, %p95
      %s98 = sadd.s32 %s97, 1
      %p101 = scmp.eq.s32.totalorder %s21, 1
      %p102 = scmp.ne.s32.totalorder %s97, %s99
      %p103 = scmp.eq.s32.totalorder %s21, 0
      %p104 = por %p102, %p103
      %p105 = scmp.ne.s32.totalorder %s97, %s99
      %p106 = scmp.eq.s32.totalorder %s26, 1
      %p107 = por %p105, %p106
      %p108 = scmp.ne.s32.totalorder %s99, %s100
      %p109 = scmp.eq.s32.totalorder %s26, 0
      %p110 = por %p108, %p109
      %p111 = scmp.ne.s32.totalorder %s99, %s100
      %p112 = scmp.eq.s32.totalorder %s27, 1
      %p113 = por %p111, %p112
      %p115 = scmp.ne.s32.totalorder %s100, %s114
      %p116 = scmp.eq.s32.totalorder %s27, 0
      %p117 = por %p115, %p116
      %s119 = sadd.s32 %s118, 1
      %p122 = scmp.eq.s32.totalorder %s21, 1
      %p123 = scmp.ne.s32.totalorder %s118, %s120
      %p124 = scmp.eq.s32.totalorder %s21, 0
      %p125 = por %p123, %p124
      %p126 = scmp.ne.s32.totalorder %s118, %s120
      %p127 = scmp.eq.s32.totalorder %s26, 1
      %p128 = por %p126, %p127
      %p129 = scmp.ne.s32.totalorder %s120, %s121
      %p130 = scmp.eq.s32.totalorder %s26, 0
      %p131 = por %p129, %p130
      %p132 = scmp.ne.s32.totalorder %s120, %s121
      %p133 = scmp.eq.s32.totalorder %s27, 1
      %p134 = por %p132, %p133
      %p136 = scmp.ne.s32.totalorder %s121, %s135
      %p137 = scmp.eq.s32.totalorder %s27, 0
      %p138 = por %p136, %p137
      %s140 = sadd.s32 %s139, 1
      %p143 = scmp.eq.s32.totalorder %s21, 1
      %p144 = scmp.ne.s32.totalorder %s139, %s141
      %p145 = scmp.eq.s32.totalorder %s21, 0
      %p146 = por %p144, %p145
      %p147 = scmp.ne.s32.totalorder %s139, %s141
      %p148 = scmp.eq.s32.totalorder %s26, 1
      %p149 = por %p147, %p148
      %p150 = scmp.ne.s32.totalorder %s141, %s142
      %p151 = scmp.eq.s32.totalorder %s26, 0
      %p152 = por %p150, %p151
      %p153 = scmp.ne.s32.totalorder %s141, %s142
      %p154 = scmp.eq.s32.totalorder %s27, 1
      %p155 = por %p153, %p154
      %p157 = scmp.ne.s32.totalorder %s142, %s156
      %p158 = scmp.eq.s32.totalorder %s27, 0
      %p159 = por %p157, %p158
      %s161 = sadd.s32 %s160, 1
      %p164 = scmp.eq.s32.totalorder %s21, 1
      %p165 = scmp.ne.s32.totalorder %s160, %s162
      %p166 = scmp.eq.s32.totalorder %s21, 0
      %p167 = por %p165, %p166
      %p168 = scmp.ne.s32.totalorder %s160, %s162
      %p169 = scmp.eq.s32.totalorder %s26, 1
      %p170 = por %p168, %p169
      %p171 = scmp.ne.s32.totalorder %s162, %s163
      %p172 = scmp.eq.s32.totalorder %s26, 0
      %p173 = por %p171, %p172
      %p174 = scmp.ne.s32.totalorder %s162, %s163
      %p175 = scmp.eq.s32.totalorder %s27, 1
      %p176 = por %p174, %p175
      %p178 = scmp.ne.s32.totalorder %s163, %s177
      %p179 = scmp.eq.s32.totalorder %s27, 0
      %p180 = por %p178, %p179
      %s182 = sadd.s32 %s181, 1
      %p185 = scmp.eq.s32.totalorder %s21, 1
      %p186 = scmp.ne.s32.totalorder %s181, %s183
      %p187 = scmp.eq.s32.totalorder %s21, 0
      %p188 = por %p186, %p187
      %p189 = scmp.ne.s32.totalorder %s181, %s183
      %p190 = scmp.eq.s32.totalorder %s26, 1
      %p191 = por %p189, %p190
      %p192 = scmp.ne.s32.totalorder %s183, %s184
      %p193 = scmp.eq.s32.totalorder %s26, 0
      %p194 = por %p192, %p193
      %p195 = scmp.ne.s32.totalorder %s183, %s184
      %p196 = scmp.eq.s32.totalorder %s27, 1
      %p197 = por %p195, %p196
      %p199 = scmp.ne.s32.totalorder %s184, %s198
      %p200 = scmp.eq.s32.totalorder %s27, 0
      %p201 = por %p199, %p200
      %s203 = sadd.s32 %s202, 1
      %p206 = scmp.eq.s32.totalorder %s21, 1
      %p207 = scmp.ne.s32.totalorder %s202, %s204
      %p208 = scmp.eq.s32.totalorder %s21, 0
      %p209 = por %p207, %p208
      %p210 = scmp.ne.s32.totalorder %s202, %s204
      %p211 = scmp.eq.s32.totalorder %s26, 1
      %p212 = por %p210, %p211
      %p213 = scmp.ne.s32.totalorder %s204, %s205
      %p214 = scmp.eq.s32.totalorder %s26, 0
      %p215 = por %p213, %p214
      %p216 = scmp.ne.s32.totalorder %s204, %s205
      %p217 = scmp.eq.s32.totalorder %s27, 1
      %p218 = por %p216, %p217
      %p220 = scmp.ne.s32.totalorder %s205, %s219
      %p221 = scmp.eq.s32.totalorder %s27, 0
      %p222 = por %p220, %p221
      %s224 = sadd.s32 %s223, 1
      %p227 = scmp.eq.s32.totalorder %s21, 1
      %p228 = scmp.ne.s32.totalorder %s223, %s225
      %p229 = scmp.eq.s32.totalorder %s21, 0
      %p230 = por %p228, %p229
      %p231 = scmp.ne.s32.totalorder %s223, %s225
      %p232 = scmp.eq.s32.totalorder %s26, 1
      %p233 = por %p231, %p232
      %p234 = scmp.ne.s32.totalorder %s225, %s226
      %p235 = scmp.eq.s32.totalorder %s26, 0
      %p236 = por %p234, %p235
      %p237 = scmp.ne.s32.totalorder %s225, %s226
      %p238 = scmp.eq.s32.totalorder %s27, 1
      %p239 = por %p237, %p238
      %p241 = scmp.ne.s32.totalorder %s226, %s240
      %p242 = scmp.eq.s32.totalorder %s27, 0
      %p243 = por %p241, %p242
      %s245 = sadd.s32 %s244, 1
      %p248 = scmp.eq.s32.totalorder %s21, 1
      %p249 = scmp.ne.s32.totalorder %s244, %s246
      %p250 = scmp.eq.s32.totalorder %s21, 0
      %p251 = por %p249, %p250
      %p252 = scmp.ne.s32.totalorder %s244, %s246
      %p253 = scmp.eq.s32.totalorder %s26, 1
      %p254 = por %p252, %p253
      %p255 = scmp.ne.s32.totalorder %s246, %s247
      %p256 = scmp.eq.s32.totalorder %s26, 0
      %p257 = por %p255, %p256
      %p258 = scmp.ne.s32.totalorder %s246, %s247
      %p259 = scmp.eq.s32.totalorder %s27, 1
      %p260 = por %p258, %p259
      %p262 = scmp.ne.s32.totalorder %s247, %s261
      %p263 = scmp.eq.s32.totalorder %s27, 0
      %p264 = por %p262, %p263
      %s266 = sadd.s32 %s265, 1
      %p269 = scmp.eq.s32.totalorder %s21, 1
      %p270 = scmp.ne.s32.totalorder %s265, %s267
      %p271 = scmp.eq.s32.totalorder %s21, 0
      %p272 = por %p270, %p271
      %p273 = scmp.ne.s32.totalorder %s265, %s267
      %p274 = scmp.eq.s32.totalorder %s26, 1
      %p275 = por %p273, %p274
      %p276 = scmp.ne.s32.totalorder %s267, %s268
      %p277 = scmp.eq.s32.totalorder %s26, 0
      %p278 = por %p276, %p277
      %p279 = scmp.ne.s32.totalorder %s267, %s268
      %p280 = scmp.eq.s32.totalorder %s27, 1
      %p281 = por %p279, %p280
      %p283 = scmp.ne.s32.totalorder %s268, %s282
      %p284 = scmp.eq.s32.totalorder %s27, 0
      %p285 = por %p283, %p284
      %s287 = sadd.s32 %s286, 1
      %p290 = scmp.eq.s32.totalorder %s21, 1
      %p291 = scmp.ne.s32.totalorder %s286, %s288
      %p292 = scmp.eq.s32.totalorder %s21, 0
      %p293 = por %p291, %p292
      %p294 = scmp.ne.s32.totalorder %s286, %s288
      %p295 = scmp.eq.s32.totalorder %s26, 1
      %p296 = por %p294, %p295
      %p297 = scmp.ne.s32.totalorder %s288, %s289
      %p298 = scmp.eq.s32.totalorder %s26, 0
      %p299 = por %p297, %p298
      %p300 = scmp.ne.s32.totalorder %s288, %s289
      %p301 = scmp.eq.s32.totalorder %s27, 1
      %p302 = por %p300, %p301
      %p304 = scmp.ne.s32.totalorder %s289, %s303
      %p305 = scmp.eq.s32.totalorder %s27, 0
      %p306 = por %p304, %p305
      %s307 = ssub.s32 %s28, %s40
      %p308 = scmp.eq.s32.totalorder %s307, 0
      %s310 = sadd.s32 %s309, 1
      %s311 = scalar_select %p308, %s309, %s310
      %p314 = pneg %p308
      %p315 = scmp.eq.s32.totalorder %s21, 1
      %p316 = por %p314, %p315
      %p317 = scmp.ne.s32.totalorder %s309, %s312
      %p318 = scmp.eq.s32.totalorder %s21, 0
      %p319 = por %p317, %p318
      %p320 = scmp.ne.s32.totalorder %s309, %s312
      %p321 = scmp.eq.s32.totalorder %s26, 1
      %p322 = por %p320, %p321
      %p323 = scmp.ne.s32.totalorder %s312, %s313
      %p324 = scmp.eq.s32.totalorder %s26, 0
      %p325 = por %p323, %p324
      %p326 = scmp.ne.s32.totalorder %s312, %s313
      %p327 = scmp.eq.s32.totalorder %s27, 1
      %p328 = por %p326, %p327
      %p330 = scmp.ne.s32.totalorder %s313, %s329
      %p331 = scmp.eq.s32.totalorder %s27, 0
      %p332 = por %p330, %p331
      %p333 = scmp.le.s32.totalorder 1, %s21
      %p334 = scmp.lt.s32.totalorder %s21, 3
      %p335 = pnand %p333, %p334
      %p336 = pneg %p335
      // Predicated region
      $region9: #{tpu_custom_call.1} parent=5 // pred_check
        _
      $region10: #{tpu_custom_call.1} parent=5 // pred_check_branch
        %338 = sbr.rel (%p335) target = $region12
      $region11: #{tpu_custom_call.1} parent=5 // pred_region
        %s339 = ssub.s32 %s21, 1
        // Predicated region
        $region13: #{tpu_custom_call.1} parent=11 // pred_check
          %p340 = pneg %p110
        $region14: #{tpu_custom_call.1} parent=11 // pred_check_branch
          %342 = sbr.rel (%p340) target = $region16
        $region15: #{tpu_custom_call.1} parent=11 // pred_region
          _
        $region16: #{tpu_custom_call.1} parent=11 // pred_fallthru
          _
        // Predicated region
        $region17: #{tpu_custom_call.1} parent=11 // pred_check
          %p343 = pneg %p131
        $region18: #{tpu_custom_call.1} parent=11 // pred_check_branch
          %345 = sbr.rel (%p343) target = $region20
        $region19: #{tpu_custom_call.1} parent=11 // pred_region
          _
        $region20: #{tpu_custom_call.1} parent=11 // pred_fallthru
          _
        // Predicated region
        $region21: #{tpu_custom_call.1} parent=11 // pred_check
          %p346 = pneg %p152
        $region22: #{tpu_custom_call.1} parent=11 // pred_check_branch
          %348 = sbr.rel (%p346) target = $region24
        $region23: #{tpu_custom_call.1} parent=11 // pred_region
          _
        $region24: #{tpu_custom_call.1} parent=11 // pred_fallthru
          _
        // Predicated region
        $region25: #{tpu_custom_call.1} parent=11 // pred_check
          %p349 = pneg %p173
        $region26: #{tpu_custom_call.1} parent=11 // pred_check_branch
          %351 = sbr.rel (%p349) target = $region28
        $region27: #{tpu_custom_call.1} parent=11 // pred_region
          _
        $region28: #{tpu_custom_call.1} parent=11 // pred_fallthru
          _
        // Predicated region
        $region29: #{tpu_custom_call.1} parent=11 // pred_check
          %p352 = pneg %p194
        $region30: #{tpu_custom_call.1} parent=11 // pred_check_branch
          %354 = sbr.rel (%p352) target = $region32
        $region31: #{tpu_custom_call.1} parent=11 // pred_region
          _
        $region32: #{tpu_custom_call.1} parent=11 // pred_fallthru
          _
        // Predicated region
        $region33: #{tpu_custom_call.1} parent=11 // pred_check
          %p355 = pneg %p215
        $region34: #{tpu_custom_call.1} parent=11 // pred_check_branch
          %357 = sbr.rel (%p355) target = $region36
        $region35: #{tpu_custom_call.1} parent=11 // pred_region
          _
        $region36: #{tpu_custom_call.1} parent=11 // pred_fallthru
          _
        // Predicated region
        $region37: #{tpu_custom_call.1} parent=11 // pred_check
          %p358 = pneg %p236
        $region38: #{tpu_custom_call.1} parent=11 // pred_check_branch
          %360 = sbr.rel (%p358) target = $region40
        $region39: #{tpu_custom_call.1} parent=11 // pred_region
          _
        $region40: #{tpu_custom_call.1} parent=11 // pred_fallthru
          _
        // Predicated region
        $region41: #{tpu_custom_call.1} parent=11 // pred_check
          %p361 = pneg %p257
        $region42: #{tpu_custom_call.1} parent=11 // pred_check_branch
          %363 = sbr.rel (%p361) target = $region44
        $region43: #{tpu_custom_call.1} parent=11 // pred_region
          _
        $region44: #{tpu_custom_call.1} parent=11 // pred_fallthru
          _
        // Predicated region
        $region45: #{tpu_custom_call.1} parent=11 // pred_check
          %p364 = pneg %p278
        $region46: #{tpu_custom_call.1} parent=11 // pred_check_branch
          %366 = sbr.rel (%p364) target = $region48
        $region47: #{tpu_custom_call.1} parent=11 // pred_region
          _
        $region48: #{tpu_custom_call.1} parent=11 // pred_fallthru
          _
        // Predicated region
        $region49: #{tpu_custom_call.1} parent=11 // pred_check
          %p367 = pneg %p299
        $region50: #{tpu_custom_call.1} parent=11 // pred_check_branch
          %369 = sbr.rel (%p367) target = $region52
        $region51: #{tpu_custom_call.1} parent=11 // pred_region
          _
        $region52: #{tpu_custom_call.1} parent=11 // pred_fallthru
          _
      $region12: #{tpu_custom_call.1} parent=5 // pred_fallthru
        _
      %p370 = scmp.lt.s32.totalorder %s21, 2
      // Predicated region
      $region53: #{tpu_custom_call.1} parent=5 // pred_check
        %p371 = pneg %p370
      $region54: #{tpu_custom_call.1} parent=5 // pred_check_branch
        %373 = sbr.rel (%p371) target = $region56
      $region55: #{tpu_custom_call.1} parent=5 // pred_region
        // Predicated region
        $region57: #{tpu_custom_call.1} parent=55 // pred_check
          %p374 = pneg %p55
        $region58: #{tpu_custom_call.1} parent=55 // pred_check_branch
          %376 = sbr.rel (%p374) target = $region60
        $region59: #{tpu_custom_call.1} parent=55 // pred_region
          %s377 = sadd.s32 %s28, %s29
          %s378 = smul.u32 64, %s377
          %p379 = scmp.lt.s32.totalorder %s378, 127
          %s380 = scalar_select %p379, %s378, 127
          %s381 = smul.addr %s380, 4
          %s382 = scalar_lea.vmem %s0, %s381
          %s383 = sadd.s32 %s28, %s29
          %s384 = smul.u32 64, %s383
        $region60: #{tpu_custom_call.1} parent=55 // pred_fallthru
          _
        // Predicated region
        $region61: #{tpu_custom_call.1} parent=55 // pred_check
          %p385 = pneg %p83
        $region62: #{tpu_custom_call.1} parent=55 // pred_check_branch
          %387 = sbr.rel (%p385) target = $region64
        $region63: #{tpu_custom_call.1} parent=55 // pred_region
          %s388 = sadd.s32 %s28, %s29
          %s389 = smul.u32 64, %s388
          %p390 = scmp.lt.s32.totalorder %s389, 127
          %s391 = scalar_select %p390, %s389, 127
          %s392 = smul.addr %s391, 4
          %s393 = scalar_lea.vmem %s1, %s392
          %s394 = sadd.s32 %s28, %s29
          %s395 = smul.u32 64, %s394
        $region64: #{tpu_custom_call.1} parent=55 // pred_fallthru
          _
      $region56: #{tpu_custom_call.1} parent=5 // pred_fallthru
        _
      %p396 = scmp.le.s32.totalorder 1, %s21
      %p397 = scmp.lt.s32.totalorder %s21, 3
      %p398 = pnand %p396, %p397
      %p399 = pneg %p398
      // Predicated region
      $region65: #{tpu_custom_call.1} parent=5 // pred_check
        _
      $region66: #{tpu_custom_call.1} parent=5 // pred_check_branch
        %401 = sbr.rel (%p398) target = $region68
      $region67: #{tpu_custom_call.1} parent=5 // pred_region
        %s402 = ssub.s32 %s21, 1
        %s403 = sadd.s32 %s30, %s31
        %s404 = smul.u32 64, %s403
        %p405 = scmp.lt.s32.totalorder %s404, 127
        %s406 = scalar_select %p405, %s404, 127
        %s407 = smul.addr %s406, 4
        %s408 = scalar_lea.vmem %s0, %s407
        %p409 = pneg %p61
        %p410 = pneg %p58
        %s411 = sadd.s32 %s30, %s31
        %s412 = smul.u32 64, %s411
        %p413 = scmp.lt.s32.totalorder %s412, 127
        %s414 = scalar_select %p413, %s412, 127
        %s415 = smul.addr %s414, 4
        %s416 = scalar_lea.vmem %s1, %s415
        %p417 = pneg %p89
        %p418 = pneg %p86
        %p419 = pneg %p110
        %p420 = pneg %p107
        %p421 = pneg %p131
        %p422 = pneg %p128
        %p423 = pneg %p152
        %p424 = pneg %p149
        %p425 = pneg %p173
        %p426 = pneg %p170
        %p427 = pneg %p194
        %p428 = pneg %p191
        %p429 = pneg %p215
        %p430 = pneg %p212
        %p431 = pneg %p236
        %p432 = pneg %p233
        %p433 = pneg %p257
        %p434 = pneg %p254
        %p435 = pneg %p278
        %p436 = pneg %p275
        %p437 = pneg %p299
        %p438 = pneg %p296
        %p439 = pneg %p325
        %p440 = pneg %p322
        %s441 = sand.u32 %s312, 1
        %s442 = scalar_lea.sflag [#allocation3], %s441
        %s443 = sand.u32 %s312, 1
        %s444 = smul.addr %s443, 16
        %s445 = scalar_lea.vmem [#allocation2], %s444
        %s446 = sadd.s32 %s30, %s31
        %s447 = smul.u32 64, %s446
        %p448 = scmp.lt.s32.totalorder %s447, 127
        %s449 = scalar_select %p448, %s447, 127
        %s450 = smul.addr %s449, 4
        %s451 = scalar_lea.vmem %s0, %s450
        %s452 = sadd.s32 %s30, %s31
        %s453 = smul.u32 64, %s452
        %s454 = sadd.s32 %s30, %s31
        %s455 = smul.u32 64, %s454
        %p456 = scmp.lt.s32.totalorder %s455, 127
        %s457 = scalar_select %p456, %s455, 127
        %s458 = smul.addr %s457, 4
        %s459 = scalar_lea.vmem %s1, %s458
        %s460 = sadd.s32 %s30, %s31
        %s461 = smul.u32 64, %s460
        %p463 = scmp.eq.s32.totalorder %s31, 0
        // Predicated region
        $region69: #{tpu_custom_call.1} parent=67 // pred_check
          %p464 = pneg %p463
        $region70: #{tpu_custom_call.1} parent=67 // pred_check_branch
          %466 = sbr.rel (%p464) target = $region72
        $region71: #{tpu_custom_call.1} parent=67 // pred_region
          %467 = vst [vmem:[%s445] sm:$0xff] 0.0
          %468 = vst [vmem:[%s445 + $0x8] sm:$0xff] 0.0
        $region72: #{tpu_custom_call.1} parent=67 // pred_fallthru
          _
        %v469 = vld [vmem:[%s451] sm:$0xf]
        %v470 = vld [vmem:[%s451 + $0x4] sm:$0xf]
        %v471 = vld [vmem:[%s451 + $0x8] sm:$0xf]
        %v472 = vld [vmem:[%s451 + $0xc] sm:$0xf]
        %v473 = vld [vmem:[%s451 + $0x10] sm:$0xf]
        %v474 = vld [vmem:[%s451 + $0x14] sm:$0xf]
        %v475 = vld [vmem:[%s451 + $0x18] sm:$0xf]
        %v476 = vld [vmem:[%s451 + $0x1c] sm:$0xf]
        %v477 = vld [vmem:[%s451 + $0x20] sm:$0xf]
        %v478 = vld [vmem:[%s451 + $0x24] sm:$0xf]
        %v479 = vld [vmem:[%s451 + $0x28] sm:$0xf]
        %v480 = vld [vmem:[%s451 + $0x2c] sm:$0xf]
        %v481 = vld [vmem:[%s451 + $0x30] sm:$0xf]
        %v482 = vld [vmem:[%s451 + $0x34] sm:$0xf]
        %v483 = vld [vmem:[%s451 + $0x38] sm:$0xf]
        %v484 = vld [vmem:[%s451 + $0x3c] sm:$0xf]
        %v485 = vld [vmem:[%s451 + $0x40] sm:$0xf]
        %v486 = vld [vmem:[%s451 + $0x44] sm:$0xf]
        %v487 = vld [vmem:[%s451 + $0x48] sm:$0xf]
        %v488 = vld [vmem:[%s451 + $0x4c] sm:$0xf]
        %v489 = vld [vmem:[%s451 + $0x50] sm:$0xf]
        %v490 = vld [vmem:[%s451 + $0x54] sm:$0xf]
        %v491 = vld [vmem:[%s451 + $0x58] sm:$0xf]
        %v492 = vld [vmem:[%s451 + $0x5c] sm:$0xf]
        %v493 = vld [vmem:[%s451 + $0x60] sm:$0xf]
        %v494 = vld [vmem:[%s451 + $0x64] sm:$0xf]
        %v495 = vld [vmem:[%s451 + $0x68] sm:$0xf]
        %v496 = vld [vmem:[%s451 + $0x6c] sm:$0xf]
        %v497 = vld [vmem:[%s451 + $0x70] sm:$0xf]
        %v498 = vld [vmem:[%s451 + $0x74] sm:$0xf]
        %v499 = vld [vmem:[%s451 + $0x78] sm:$0xf]
        %v500 = vld [vmem:[%s451 + $0x7c] sm:$0xf]
        %v501 = vld [vmem:[%s451 + $0x80] sm:$0xf]
        %v502 = vld [vmem:[%s451 + $0x84] sm:$0xf]
        %v503 = vld [vmem:[%s451 + $0x88] sm:$0xf]
        %v504 = vld [vmem:[%s451 + $0x8c] sm:$0xf]
        %v505 = vld [vmem:[%s451 + $0x90] sm:$0xf]
        %v506 = vld [vmem:[%s451 + $0x94] sm:$0xf]
        %v507 = vld [vmem:[%s451 + $0x98] sm:$0xf]
        %v508 = vld [vmem:[%s451 + $0x9c] sm:$0xf]
        %v509 = vld [vmem:[%s451 + $0xa0] sm:$0xf]
        %v510 = vld [vmem:[%s451 + $0xa4] sm:$0xf]
        %v511 = vld [vmem:[%s451 + $0xa8] sm:$0xf]
        %v512 = vld [vmem:[%s451 + $0xac] sm:$0xf]
        %v513 = vld [vmem:[%s451 + $0xb0] sm:$0xf]
        %v514 = vld [vmem:[%s451 + $0xb4] sm:$0xf]
        %v515 = vld [vmem:[%s451 + $0xb8] sm:$0xf]
        %v516 = vld [vmem:[%s451 + $0xbc] sm:$0xf]
        %v517 = vld [vmem:[%s451 + $0xc0] sm:$0xf]
        %v518 = vld [vmem:[%s451 + $0xc4] sm:$0xf]
        %v519 = vld [vmem:[%s451 + $0xc8] sm:$0xf]
        %v520 = vld [vmem:[%s451 + $0xcc] sm:$0xf]
        %v521 = vld [vmem:[%s451 + $0xd0] sm:$0xf]
        %v522 = vld [vmem:[%s451 + $0xd4] sm:$0xf]
        %v523 = vld [vmem:[%s451 + $0xd8] sm:$0xf]
        %v524 = vld [vmem:[%s451 + $0xdc] sm:$0xf]
        %v525 = vld [vmem:[%s451 + $0xe0] sm:$0xf]
        %v526 = vld [vmem:[%s451 + $0xe4] sm:$0xf]
        %v527 = vld [vmem:[%s451 + $0xe8] sm:$0xf]
        %v528 = vld [vmem:[%s451 + $0xec] sm:$0xf]
        %v529 = vld [vmem:[%s451 + $0xf0] sm:$0xf]
        %v530 = vld [vmem:[%s451 + $0xf4] sm:$0xf]
        %v531 = vld [vmem:[%s451 + $0xf8] sm:$0xf]
        %v532 = vld [vmem:[%s451 + $0xfc] sm:$0xf]
        %v533 = vld [vmem:[%s3] sm:$0xf]
        %v534 = vld [vmem:[%s4] sm:$0x1]
        %v536 = vperm.slane %v534, 0
        %v602 = vunpack.c.l.b16 %v469
        %v603 = vunpack.c.l.b16 %v470
        %v604 = vunpack.c.l.b16 %v471
        %v605 = vunpack.c.l.b16 %v472
        %v606 = vunpack.c.l.b16 %v473
        %v607 = vunpack.c.l.b16 %v474
        %v608 = vunpack.c.l.b16 %v475
        %v609 = vunpack.c.l.b16 %v476
        %v610 = vunpack.c.l.b16 %v477
        %v611 = vunpack.c.l.b16 %v478
        %v612 = vunpack.c.l.b16 %v479
        %v613 = vunpack.c.l.b16 %v480
        %v614 = vunpack.c.l.b16 %v481
        %v615 = vunpack.c.l.b16 %v482
        %v616 = vunpack.c.l.b16 %v483
        %v617 = vunpack.c.l.b16 %v484
        %v618 = vunpack.c.l.b16 %v485
        %v619 = vunpack.c.l.b16 %v486
        %v620 = vunpack.c.l.b16 %v487
        %v621 = vunpack.c.l.b16 %v488
        %v622 = vunpack.c.l.b16 %v489
        %v623 = vunpack.c.l.b16 %v490
        %v624 = vunpack.c.l.b16 %v491
        %v625 = vunpack.c.l.b16 %v492
        %v626 = vunpack.c.l.b16 %v493
        %v627 = vunpack.c.l.b16 %v494
        %v628 = vunpack.c.l.b16 %v495
        %v629 = vunpack.c.l.b16 %v496
        %v630 = vunpack.c.l.b16 %v497
        %v631 = vunpack.c.l.b16 %v498
        %v632 = vunpack.c.l.b16 %v499
        %v633 = vunpack.c.l.b16 %v500
        %v634 = vunpack.c.l.b16 %v501
        %v635 = vunpack.c.l.b16 %v502
        %v636 = vunpack.c.l.b16 %v503
        %v637 = vunpack.c.l.b16 %v504
        %v638 = vunpack.c.l.b16 %v505
        %v639 = vunpack.c.l.b16 %v506
        %v640 = vunpack.c.l.b16 %v507
        %v641 = vunpack.c.l.b16 %v508
        %v642 = vunpack.c.l.b16 %v509
        %v643 = vunpack.c.l.b16 %v510
        %v644 = vunpack.c.l.b16 %v511
        %v645 = vunpack.c.l.b16 %v512
        %v646 = vunpack.c.l.b16 %v513
        %v647 = vunpack.c.l.b16 %v514
        %v648 = vunpack.c.l.b16 %v515
        %v649 = vunpack.c.l.b16 %v516
        %v650 = vunpack.c.l.b16 %v517
        %v651 = vunpack.c.l.b16 %v518
        %v652 = vunpack.c.l.b16 %v519
        %v653 = vunpack.c.l.b16 %v520
        %v654 = vunpack.c.l.b16 %v521
        %v655 = vunpack.c.l.b16 %v522
        %v656 = vunpack.c.l.b16 %v523
        %v657 = vunpack.c.l.b16 %v524
        %v658 = vunpack.c.l.b16 %v525
        %v659 = vunpack.c.l.b16 %v526
        %v660 = vunpack.c.l.b16 %v527
        %v661 = vunpack.c.l.b16 %v528
        %v662 = vunpack.c.l.b16 %v529
        %v663 = vunpack.c.l.b16 %v530
        %v664 = vunpack.c.l.b16 %v531
        %v665 = vunpack.c.l.b16 %v532
        %v666 = vpack.c.b16 %v603, %v602
        %v667 = vpack.c.b16 %v605, %v604
        %v668 = vpack.c.b16 %v607, %v606
        %v669 = vpack.c.b16 %v609, %v608
        %v670 = vpack.c.b16 %v611, %v610
        %v671 = vpack.c.b16 %v613, %v612
        %v672 = vpack.c.b16 %v615, %v614
        %v673 = vpack.c.b16 %v617, %v616
        %v674 = vpack.c.b16 %v619, %v618
        %v675 = vpack.c.b16 %v621, %v620
        %v676 = vpack.c.b16 %v623, %v622
        %v677 = vpack.c.b16 %v625, %v624
        %v678 = vpack.c.b16 %v627, %v626
        %v679 = vpack.c.b16 %v629, %v628
        %v680 = vpack.c.b16 %v631, %v630
        %v681 = vpack.c.b16 %v633, %v632
        %v682 = vpack.c.b16 %v635, %v634
        %v683 = vpack.c.b16 %v637, %v636
        %v684 = vpack.c.b16 %v639, %v638
        %v685 = vpack.c.b16 %v641, %v640
        %v686 = vpack.c.b16 %v643, %v642
        %v687 = vpack.c.b16 %v645, %v644
        %v688 = vpack.c.b16 %v647, %v646
        %v689 = vpack.c.b16 %v649, %v648
        %v690 = vpack.c.b16 %v651, %v650
        %v691 = vpack.c.b16 %v653, %v652
        %v692 = vpack.c.b16 %v655, %v654
        %v693 = vpack.c.b16 %v657, %v656
        %v694 = vpack.c.b16 %v659, %v658
        %v695 = vpack.c.b16 %v661, %v660
        %v696 = vpack.c.b16 %v663, %v662
        %v697 = vpack.c.b16 %v665, %v664
        %vm698 = vcmask 64512
        %v700 = vsel %vm698, %v666, 0
        %v703 = vsel %vm698, %v667, 0
        %v706 = vsel %vm698, %v668, 0
        %v709 = vsel %vm698, %v669, 0
        %v712 = vsel %vm698, %v670, 0
        %v715 = vsel %vm698, %v671, 0
        %v718 = vsel %vm698, %v672, 0
        %v721 = vsel %vm698, %v673, 0
        %v724 = vsel %vm698, %v674, 0
        %v727 = vsel %vm698, %v675, 0
        %v730 = vsel %vm698, %v676, 0
        %v733 = vsel %vm698, %v677, 0
        %v736 = vsel %vm698, %v678, 0
        %v739 = vsel %vm698, %v679, 0
        %v742 = vsel %vm698, %v680, 0
        %v745 = vsel %vm698, %v681, 0
        %v748 = vsel %vm698, %v682, 0
        %v751 = vsel %vm698, %v683, 0
        %v754 = vsel %vm698, %v684, 0
        %v757 = vsel %vm698, %v685, 0
        %v760 = vsel %vm698, %v686, 0
        %v763 = vsel %vm698, %v687, 0
        %v766 = vsel %vm698, %v688, 0
        %v769 = vsel %vm698, %v689, 0
        %v772 = vsel %vm698, %v690, 0
        %v775 = vsel %vm698, %v691, 0
        %v778 = vsel %vm698, %v692, 0
        %v781 = vsel %vm698, %v693, 0
        %v784 = vsel %vm698, %v694, 0
        %v787 = vsel %vm698, %v695, 0
        %v790 = vsel %vm698, %v696, 0
        %v793 = vsel %vm698, %v697, 0
        %vm795 = vcmask 1043456
        %v797 = vsel %vm795, %v533, 0
        %799 = vmatpush.bf16.msra.mxu0 0
        %800 = vmatpush.bf16.msra.mxu0 0
        %801 = vmatpush.bf16.msra.mxu0 0
        %802 = vmatpush.bf16.msra.mxu0 0
        %803 = vmatpush.bf16.msra.mxu0 0
        %804 = vmatpush.bf16.msra.mxu0 0
        %805 = vmatpush.bf16.msra.mxu0 0
        %806 = vmatpush.bf16.msra.mxu0 %v797
        %807 = vmatmul.bf16.gmra.mxu0 %v700
        %v808 = vpop.f32.mrf.mxu0
        %v809 = vadd.f32 %v536, %v808
        %v810 = vpop.f32.mrf.mxu0
        %v811 = vadd.f32 %v536, %v810
        %812 = vmatmul.bf16.gmra.mxu0 %v703
        %v813 = vpop.f32.mrf.mxu0
        %v814 = vadd.f32 %v536, %v813
        %v815 = vpop.f32.mrf.mxu0
        %v816 = vadd.f32 %v536, %v815
        %817 = vmatmul.bf16.gmra.mxu0 %v706
        %v818 = vpop.f32.mrf.mxu0
        %v819 = vadd.f32 %v536, %v818
        %v820 = vpop.f32.mrf.mxu0
        %v821 = vadd.f32 %v536, %v820
        %822 = vmatmul.bf16.gmra.mxu0 %v709
        %v823 = vpop.f32.mrf.mxu0
        %v824 = vadd.f32 %v536, %v823
        %v825 = vpop.f32.mrf.mxu0
        %v826 = vadd.f32 %v536, %v825
        %827 = vmatmul.bf16.gmra.mxu0 %v712
        %v828 = vpop.f32.mrf.mxu0
        %v829 = vadd.f32 %v536, %v828
        %v830 = vpop.f32.mrf.mxu0
        %v831 = vadd.f32 %v536, %v830
        %832 = vmatmul.bf16.gmra.mxu0 %v715
        %v833 = vpop.f32.mrf.mxu0
        %v834 = vadd.f32 %v536, %v833
        %v835 = vpop.f32.mrf.mxu0
        %v836 = vadd.f32 %v536, %v835
        %837 = vmatmul.bf16.gmra.mxu0 %v718
        %v838 = vpop.f32.mrf.mxu0
        %v839 = vadd.f32 %v536, %v838
        %v840 = vpop.f32.mrf.mxu0
        %v841 = vadd.f32 %v536, %v840
        %842 = vmatmul.bf16.gmra.mxu0 %v721
        %v843 = vpop.f32.mrf.mxu0
        %v844 = vadd.f32 %v536, %v843
        %v845 = vpop.f32.mrf.mxu0
        %v846 = vadd.f32 %v536, %v845
        %847 = vmatmul.bf16.gmra.mxu0 %v724
        %v848 = vpop.f32.mrf.mxu0
        %v849 = vadd.f32 %v536, %v848
        %v850 = vpop.f32.mrf.mxu0
        %v851 = vadd.f32 %v536, %v850
        %852 = vmatmul.bf16.gmra.mxu0 %v727
        %v853 = vpop.f32.mrf.mxu0
        %v854 = vadd.f32 %v536, %v853
        %v855 = vpop.f32.mrf.mxu0
        %v856 = vadd.f32 %v536, %v855
        %857 = vmatmul.bf16.gmra.mxu0 %v730
        %v858 = vpop.f32.mrf.mxu0
        %v859 = vadd.f32 %v536, %v858
        %v860 = vpop.f32.mrf.mxu0
        %v861 = vadd.f32 %v536, %v860
        %862 = vmatmul.bf16.gmra.mxu0 %v733
        %v863 = vpop.f32.mrf.mxu0
        %v864 = vadd.f32 %v536, %v863
        %v865 = vpop.f32.mrf.mxu0
        %v866 = vadd.f32 %v536, %v865
        %867 = vmatmul.bf16.gmra.mxu0 %v736
        %v868 = vpop.f32.mrf.mxu0
        %v869 = vadd.f32 %v536, %v868
        %v870 = vpop.f32.mrf.mxu0
        %v871 = vadd.f32 %v536, %v870
        %872 = vmatmul.bf16.gmra.mxu0 %v739
        %v873 = vpop.f32.mrf.mxu0
        %v874 = vadd.f32 %v536, %v873
        %v875 = vpop.f32.mrf.mxu0
        %v876 = vadd.f32 %v536, %v875
        %877 = vmatmul.bf16.gmra.mxu0 %v742
        %v878 = vpop.f32.mrf.mxu0
        %v879 = vadd.f32 %v536, %v878
        %v880 = vpop.f32.mrf.mxu0
        %v881 = vadd.f32 %v536, %v880
        %882 = vmatmul.bf16.gmra.mxu0 %v745
        %v883 = vpop.f32.mrf.mxu0
        %v884 = vadd.f32 %v536, %v883
        %v885 = vpop.f32.mrf.mxu0
        %v886 = vadd.f32 %v536, %v885
        %887 = vmatmul.bf16.gmra.mxu0 %v748
        %v888 = vpop.f32.mrf.mxu0
        %v889 = vadd.f32 %v536, %v888
        %v890 = vpop.f32.mrf.mxu0
        %v891 = vadd.f32 %v536, %v890
        %892 = vmatmul.bf16.gmra.mxu0 %v751
        %v893 = vpop.f32.mrf.mxu0
        %v894 = vadd.f32 %v536, %v893
        %v895 = vpop.f32.mrf.mxu0
        %v896 = vadd.f32 %v536, %v895
        %897 = vmatmul.bf16.gmra.mxu0 %v754
        %v898 = vpop.f32.mrf.mxu0
        %v899 = vadd.f32 %v536, %v898
        %v900 = vpop.f32.mrf.mxu0
        %v901 = vadd.f32 %v536, %v900
        %902 = vmatmul.bf16.gmra.mxu0 %v757
        %v903 = vpop.f32.mrf.mxu0
        %v904 = vadd.f32 %v536, %v903
        %v905 = vpop.f32.mrf.mxu0
        %v906 = vadd.f32 %v536, %v905
        %907 = vmatmul.bf16.gmra.mxu0 %v760
        %v908 = vpop.f32.mrf.mxu0
        %v909 = vadd.f32 %v536, %v908
        %v910 = vpop.f32.mrf.mxu0
        %v911 = vadd.f32 %v536, %v910
        %912 = vmatmul.bf16.gmra.mxu0 %v763
        %v913 = vpop.f32.mrf.mxu0
        %v914 = vadd.f32 %v536, %v913
        %v915 = vpop.f32.mrf.mxu0
        %v916 = vadd.f32 %v536, %v915
        %917 = vmatmul.bf16.gmra.mxu0 %v766
        %v918 = vpop.f32.mrf.mxu0
        %v919 = vadd.f32 %v536, %v918
        %v920 = vpop.f32.mrf.mxu0
        %v921 = vadd.f32 %v536, %v920
        %922 = vmatmul.bf16.gmra.mxu0 %v769
        %v923 = vpop.f32.mrf.mxu0
        %v924 = vadd.f32 %v536, %v923
        %v925 = vpop.f32.mrf.mxu0
        %v926 = vadd.f32 %v536, %v925
        %927 = vmatmul.bf16.gmra.mxu0 %v772
        %v928 = vpop.f32.mrf.mxu0
        %v929 = vadd.f32 %v536, %v928
        %v930 = vpop.f32.mrf.mxu0
        %v931 = vadd.f32 %v536, %v930
        %932 = vmatmul.bf16.gmra.mxu0 %v775
        %v933 = vpop.f32.mrf.mxu0
        %v934 = vadd.f32 %v536, %v933
        %v935 = vpop.f32.mrf.mxu0
        %v936 = vadd.f32 %v536, %v935
        %937 = vmatmul.bf16.gmra.mxu0 %v778
        %v938 = vpop.f32.mrf.mxu0
        %v939 = vadd.f32 %v536, %v938
        %v940 = vpop.f32.mrf.mxu0
        %v941 = vadd.f32 %v536, %v940
        %942 = vmatmul.bf16.gmra.mxu0 %v781
        %v943 = vpop.f32.mrf.mxu0
        %v944 = vadd.f32 %v536, %v943
        %v945 = vpop.f32.mrf.mxu0
        %v946 = vadd.f32 %v536, %v945
        %947 = vmatmul.bf16.gmra.mxu0 %v784
        %v948 = vpop.f32.mrf.mxu0
        %v949 = vadd.f32 %v536, %v948
        %v950 = vpop.f32.mrf.mxu0
        %v951 = vadd.f32 %v536, %v950
        %952 = vmatmul.bf16.gmra.mxu0 %v787
        %v953 = vpop.f32.mrf.mxu0
        %v954 = vadd.f32 %v536, %v953
        %v955 = vpop.f32.mrf.mxu0
        %v956 = vadd.f32 %v536, %v955
        %957 = vmatmul.bf16.gmra.mxu0 %v790
        %v958 = vpop.f32.mrf.mxu0
        %v959 = vadd.f32 %v536, %v958
        %v960 = vpop.f32.mrf.mxu0
        %v961 = vadd.f32 %v536, %v960
        %962 = vmatmul.bf16.gmra.mxu0 %v793
        %v963 = vpop.f32.mrf.mxu0
        %v964 = vadd.f32 %v536, %v963
        %v965 = vpop.f32.mrf.mxu0
        %v966 = vadd.f32 %v536, %v965
        %967 = vdwg.mxu0
        %v968 = vmax.f32 %v809, 0.0
        %v969 = vmax.f32 %v811, 0.0
        %v970 = vmax.f32 %v814, 0.0
        %v971 = vmax.f32 %v816, 0.0
        %v972 = vmax.f32 %v819, 0.0
        %v973 = vmax.f32 %v821, 0.0
        %v974 = vmax.f32 %v824, 0.0
        %v975 = vmax.f32 %v826, 0.0
        %v976 = vmax.f32 %v829, 0.0
        %v977 = vmax.f32 %v831, 0.0
        %v978 = vmax.f32 %v834, 0.0
        %v979 = vmax.f32 %v836, 0.0
        %v980 = vmax.f32 %v839, 0.0
        %v981 = vmax.f32 %v841, 0.0
        %v982 = vmax.f32 %v844, 0.0
        %v983 = vmax.f32 %v846, 0.0
        %v984 = vmax.f32 %v849, 0.0
        %v985 = vmax.f32 %v851, 0.0
        %v986 = vmax.f32 %v854, 0.0
        %v987 = vmax.f32 %v856, 0.0
        %v988 = vmax.f32 %v859, 0.0
        %v989 = vmax.f32 %v861, 0.0
        %v990 = vmax.f32 %v864, 0.0
        %v991 = vmax.f32 %v866, 0.0
        %v992 = vmax.f32 %v869, 0.0
        %v993 = vmax.f32 %v871, 0.0
        %v994 = vmax.f32 %v874, 0.0
        %v995 = vmax.f32 %v876, 0.0
        %v996 = vmax.f32 %v879, 0.0
        %v997 = vmax.f32 %v881, 0.0
        %v998 = vmax.f32 %v884, 0.0
        %v999 = vmax.f32 %v886, 0.0
        %v1000 = vmax.f32 %v889, 0.0
        %v1001 = vmax.f32 %v891, 0.0
        %v1002 = vmax.f32 %v894, 0.0
        %v1003 = vmax.f32 %v896, 0.0
        %v1004 = vmax.f32 %v899, 0.0
        %v1005 = vmax.f32 %v901, 0.0
        %v1006 = vmax.f32 %v904, 0.0
        %v1007 = vmax.f32 %v906, 0.0
        %v1008 = vmax.f32 %v909, 0.0
        %v1009 = vmax.f32 %v911, 0.0
        %v1010 = vmax.f32 %v914, 0.0
        %v1011 = vmax.f32 %v916, 0.0
        %v1012 = vmax.f32 %v919, 0.0
        %v1013 = vmax.f32 %v921, 0.0
        %v1014 = vmax.f32 %v924, 0.0
        %v1015 = vmax.f32 %v926, 0.0
        %v1016 = vmax.f32 %v929, 0.0
        %v1017 = vmax.f32 %v931, 0.0
        %v1018 = vmax.f32 %v934, 0.0
        %v1019 = vmax.f32 %v936, 0.0
        %v1020 = vmax.f32 %v939, 0.0
        %v1021 = vmax.f32 %v941, 0.0
        %v1022 = vmax.f32 %v944, 0.0
        %v1023 = vmax.f32 %v946, 0.0
        %v1024 = vmax.f32 %v949, 0.0
        %v1025 = vmax.f32 %v951, 0.0
        %v1026 = vmax.f32 %v954, 0.0
        %v1027 = vmax.f32 %v956, 0.0
        %v1028 = vmax.f32 %v959, 0.0
        %v1029 = vmax.f32 %v961, 0.0
        %v1030 = vmax.f32 %v964, 0.0
        %v1031 = vmax.f32 %v966, 0.0
        %v1032 = vpack.c.bf16 %v969, %v968
        %v1033 = vpack.c.bf16 %v971, %v970
        %v1034 = vpack.c.bf16 %v973, %v972
        %v1035 = vpack.c.bf16 %v975, %v974
        %v1036 = vpack.c.bf16 %v977, %v976
        %v1037 = vpack.c.bf16 %v979, %v978
        %v1038 = vpack.c.bf16 %v981, %v980
        %v1039 = vpack.c.bf16 %v983, %v982
        %v1040 = vpack.c.bf16 %v985, %v984
        %v1041 = vpack.c.bf16 %v987, %v986
        %v1042 = vpack.c.bf16 %v989, %v988
        %v1043 = vpack.c.bf16 %v991, %v990
        %v1044 = vpack.c.bf16 %v993, %v992
        %v1045 = vpack.c.bf16 %v995, %v994
        %v1046 = vpack.c.bf16 %v997, %v996
        %v1047 = vpack.c.bf16 %v999, %v998
        %v1048 = vpack.c.bf16 %v1001, %v1000
        %v1049 = vpack.c.bf16 %v1003, %v1002
        %v1050 = vpack.c.bf16 %v1005, %v1004
        %v1051 = vpack.c.bf16 %v1007, %v1006
        %v1052 = vpack.c.bf16 %v1009, %v1008
        %v1053 = vpack.c.bf16 %v1011, %v1010
        %v1054 = vpack.c.bf16 %v1013, %v1012
        %v1055 = vpack.c.bf16 %v1015, %v1014
        %v1056 = vpack.c.bf16 %v1017, %v1016
        %v1057 = vpack.c.bf16 %v1019, %v1018
        %v1058 = vpack.c.bf16 %v1021, %v1020
        %v1059 = vpack.c.bf16 %v1023, %v1022
        %v1060 = vpack.c.bf16 %v1025, %v1024
        %v1061 = vpack.c.bf16 %v1027, %v1026
        %v1062 = vpack.c.bf16 %v1029, %v1028
        %v1063 = vpack.c.bf16 %v1031, %v1030
        %v1064 = vld [vmem:[%s5] sm:$0xf]
        %v1065 = vld [vmem:[%s5 + $0x4] sm:$0xf]
        %v1066 = vld [vmem:[%s5 + $0x8] sm:$0xf]
        %v1067 = vld [vmem:[%s5 + $0xc] sm:$0xf]
        %v1068 = vld [vmem:[%s5 + $0x10] sm:$0xf]
        %v1069 = vld [vmem:[%s5 + $0x14] sm:$0xf]
        %v1070 = vld [vmem:[%s5 + $0x18] sm:$0xf]
        %v1071 = vld [vmem:[%s5 + $0x1c] sm:$0xf]
        %v1072 = vld [vmem:[%s5 + $0x20] sm:$0xf]
        %v1073 = vld [vmem:[%s5 + $0x24] sm:$0xf]
        %v1074 = vld [vmem:[%s5 + $0x28] sm:$0xf]
        %v1075 = vld [vmem:[%s5 + $0x2c] sm:$0xf]
        %v1076 = vld [vmem:[%s5 + $0x30] sm:$0xf]
        %v1077 = vld [vmem:[%s5 + $0x34] sm:$0xf]
        %v1078 = vld [vmem:[%s5 + $0x38] sm:$0xf]
        %v1079 = vld [vmem:[%s5 + $0x3c] sm:$0xf]
        %v1080 = vld [vmem:[%s6] sm:$0x1]
        %v1082 = vperm.slane %v1080, 0
        %v1100 = vunpack.c.l.b16 %v1064
        %v1101 = vunpack.c.l.b16 %v1065
        %v1102 = vunpack.c.l.b16 %v1066
        %v1103 = vunpack.c.l.b16 %v1067
        %v1104 = vunpack.c.l.b16 %v1068
        %v1105 = vunpack.c.l.b16 %v1069
        %v1106 = vunpack.c.l.b16 %v1070
        %v1107 = vunpack.c.l.b16 %v1071
        %v1108 = vunpack.c.l.b16 %v1072
        %v1109 = vunpack.c.l.b16 %v1073
        %v1110 = vunpack.c.l.b16 %v1074
        %v1111 = vunpack.c.l.b16 %v1075
        %v1112 = vunpack.c.l.b16 %v1076
        %v1113 = vunpack.c.l.b16 %v1077
        %v1114 = vunpack.c.l.b16 %v1078
        %v1115 = vunpack.c.l.b16 %v1079
        %v1116 = vpack.c.b16 %v1101, %v1100
        %v1117 = vpack.c.b16 %v1103, %v1102
        %v1118 = vpack.c.b16 %v1105, %v1104
        %v1119 = vpack.c.b16 %v1107, %v1106
        %v1120 = vpack.c.b16 %v1109, %v1108
        %v1121 = vpack.c.b16 %v1111, %v1110
        %v1122 = vpack.c.b16 %v1113, %v1112
        %v1123 = vpack.c.b16 %v1115, %v1114
        %1132 = vmatpush.bf16.msra.mxu0 %v1123
        %1133 = vmatpush.bf16.msra.mxu0 %v1122
        %1134 = vmatpush.bf16.msra.mxu0 %v1121
        %1135 = vmatpush.bf16.msra.mxu0 %v1120
        %1136 = vmatpush.bf16.msra.mxu0 %v1119
        %1137 = vmatpush.bf16.msra.mxu0 %v1118
        %1138 = vmatpush.bf16.msra.mxu0 %v1117
        %1139 = vmatpush.bf16.msra.mxu0 %v1116
        %1140 = vmatmul.bf16.gmra.mxu0 %v1032
        %v1141 = vpop.f32.mrf.mxu0
        %v1142 = vadd.f32 %v1082, %v1141
        %v1143 = vpop.f32.mrf.mxu0
        %v1144 = vadd.f32 %v1082, %v1143
        %1145 = vmatmul.bf16.gmra.mxu0 %v1033
        %v1146 = vpop.f32.mrf.mxu0
        %v1147 = vadd.f32 %v1082, %v1146
        %v1148 = vpop.f32.mrf.mxu0
        %v1149 = vadd.f32 %v1082, %v1148
        %1150 = vmatmul.bf16.gmra.mxu0 %v1034
        %v1151 = vpop.f32.mrf.mxu0
        %v1152 = vadd.f32 %v1082, %v1151
        %v1153 = vpop.f32.mrf.mxu0
        %v1154 = vadd.f32 %v1082, %v1153
        %1155 = vmatmul.bf16.gmra.mxu0 %v1035
        %v1156 = vpop.f32.mrf.mxu0
        %v1157 = vadd.f32 %v1082, %v1156
        %v1158 = vpop.f32.mrf.mxu0
        %v1159 = vadd.f32 %v1082, %v1158
        %1160 = vmatmul.bf16.gmra.mxu0 %v1036
        %v1161 = vpop.f32.mrf.mxu0
        %v1162 = vadd.f32 %v1082, %v1161
        %v1163 = vpop.f32.mrf.mxu0
        %v1164 = vadd.f32 %v1082, %v1163
        %1165 = vmatmul.bf16.gmra.mxu0 %v1037
        %v1166 = vpop.f32.mrf.mxu0
        %v1167 = vadd.f32 %v1082, %v1166
        %v1168 = vpop.f32.mrf.mxu0
        %v1169 = vadd.f32 %v1082, %v1168
        %1170 = vmatmul.bf16.gmra.mxu0 %v1038
        %v1171 = vpop.f32.mrf.mxu0
        %v1172 = vadd.f32 %v1082, %v1171
        %v1173 = vpop.f32.mrf.mxu0
        %v1174 = vadd.f32 %v1082, %v1173
        %1175 = vmatmul.bf16.gmra.mxu0 %v1039
        %v1176 = vpop.f32.mrf.mxu0
        %v1177 = vadd.f32 %v1082, %v1176
        %v1178 = vpop.f32.mrf.mxu0
        %v1179 = vadd.f32 %v1082, %v1178
        %1180 = vmatmul.bf16.gmra.mxu0 %v1040
        %v1181 = vpop.f32.mrf.mxu0
        %v1182 = vadd.f32 %v1082, %v1181
        %v1183 = vpop.f32.mrf.mxu0
        %v1184 = vadd.f32 %v1082, %v1183
        %1185 = vmatmul.bf16.gmra.mxu0 %v1041
        %v1186 = vpop.f32.mrf.mxu0
        %v1187 = vadd.f32 %v1082, %v1186
        %v1188 = vpop.f32.mrf.mxu0
        %v1189 = vadd.f32 %v1082, %v1188
        %1190 = vmatmul.bf16.gmra.mxu0 %v1042
        %v1191 = vpop.f32.mrf.mxu0
        %v1192 = vadd.f32 %v1082, %v1191
        %v1193 = vpop.f32.mrf.mxu0
        %v1194 = vadd.f32 %v1082, %v1193
        %1195 = vmatmul.bf16.gmra.mxu0 %v1043
        %v1196 = vpop.f32.mrf.mxu0
        %v1197 = vadd.f32 %v1082, %v1196
        %v1198 = vpop.f32.mrf.mxu0
        %v1199 = vadd.f32 %v1082, %v1198
        %1200 = vmatmul.bf16.gmra.mxu0 %v1044
        %v1201 = vpop.f32.mrf.mxu0
        %v1202 = vadd.f32 %v1082, %v1201
        %v1203 = vpop.f32.mrf.mxu0
        %v1204 = vadd.f32 %v1082, %v1203
        %1205 = vmatmul.bf16.gmra.mxu0 %v1045
        %v1206 = vpop.f32.mrf.mxu0
        %v1207 = vadd.f32 %v1082, %v1206
        %v1208 = vpop.f32.mrf.mxu0
        %v1209 = vadd.f32 %v1082, %v1208
        %1210 = vmatmul.bf16.gmra.mxu0 %v1046
        %v1211 = vpop.f32.mrf.mxu0
        %v1212 = vadd.f32 %v1082, %v1211
        %v1213 = vpop.f32.mrf.mxu0
        %v1214 = vadd.f32 %v1082, %v1213
        %1215 = vmatmul.bf16.gmra.mxu0 %v1047
        %v1216 = vpop.f32.mrf.mxu0
        %v1217 = vadd.f32 %v1082, %v1216
        %v1218 = vpop.f32.mrf.mxu0
        %v1219 = vadd.f32 %v1082, %v1218
        %1220 = vmatmul.bf16.gmra.mxu0 %v1048
        %v1221 = vpop.f32.mrf.mxu0
        %v1222 = vadd.f32 %v1082, %v1221
        %v1223 = vpop.f32.mrf.mxu0
        %v1224 = vadd.f32 %v1082, %v1223
        %1225 = vmatmul.bf16.gmra.mxu0 %v1049
        %v1226 = vpop.f32.mrf.mxu0
        %v1227 = vadd.f32 %v1082, %v1226
        %v1228 = vpop.f32.mrf.mxu0
        %v1229 = vadd.f32 %v1082, %v1228
        %1230 = vmatmul.bf16.gmra.mxu0 %v1050
        %v1231 = vpop.f32.mrf.mxu0
        %v1232 = vadd.f32 %v1082, %v1231
        %v1233 = vpop.f32.mrf.mxu0
        %v1234 = vadd.f32 %v1082, %v1233
        %1235 = vmatmul.bf16.gmra.mxu0 %v1051
        %v1236 = vpop.f32.mrf.mxu0
        %v1237 = vadd.f32 %v1082, %v1236
        %v1238 = vpop.f32.mrf.mxu0
        %v1239 = vadd.f32 %v1082, %v1238
        %1240 = vmatmul.bf16.gmra.mxu0 %v1052
        %v1241 = vpop.f32.mrf.mxu0
        %v1242 = vadd.f32 %v1082, %v1241
        %v1243 = vpop.f32.mrf.mxu0
        %v1244 = vadd.f32 %v1082, %v1243
        %1245 = vmatmul.bf16.gmra.mxu0 %v1053
        %v1246 = vpop.f32.mrf.mxu0
        %v1247 = vadd.f32 %v1082, %v1246
        %v1248 = vpop.f32.mrf.mxu0
        %v1249 = vadd.f32 %v1082, %v1248
        %1250 = vmatmul.bf16.gmra.mxu0 %v1054
        %v1251 = vpop.f32.mrf.mxu0
        %v1252 = vadd.f32 %v1082, %v1251
        %v1253 = vpop.f32.mrf.mxu0
        %v1254 = vadd.f32 %v1082, %v1253
        %1255 = vmatmul.bf16.gmra.mxu0 %v1055
        %v1256 = vpop.f32.mrf.mxu0
        %v1257 = vadd.f32 %v1082, %v1256
        %v1258 = vpop.f32.mrf.mxu0
        %v1259 = vadd.f32 %v1082, %v1258
        %1260 = vmatmul.bf16.gmra.mxu0 %v1056
        %v1261 = vpop.f32.mrf.mxu0
        %v1262 = vadd.f32 %v1082, %v1261
        %v1263 = vpop.f32.mrf.mxu0
        %v1264 = vadd.f32 %v1082, %v1263
        %1265 = vmatmul.bf16.gmra.mxu0 %v1057
        %v1266 = vpop.f32.mrf.mxu0
        %v1267 = vadd.f32 %v1082, %v1266
        %v1268 = vpop.f32.mrf.mxu0
        %v1269 = vadd.f32 %v1082, %v1268
        %1270 = vmatmul.bf16.gmra.mxu0 %v1058
        %v1271 = vpop.f32.mrf.mxu0
        %v1272 = vadd.f32 %v1082, %v1271
        %v1273 = vpop.f32.mrf.mxu0
        %v1274 = vadd.f32 %v1082, %v1273
        %1275 = vmatmul.bf16.gmra.mxu0 %v1059
        %v1276 = vpop.f32.mrf.mxu0
        %v1277 = vadd.f32 %v1082, %v1276
        %v1278 = vpop.f32.mrf.mxu0
        %v1279 = vadd.f32 %v1082, %v1278
        %1280 = vmatmul.bf16.gmra.mxu0 %v1060
        %v1281 = vpop.f32.mrf.mxu0
        %v1282 = vadd.f32 %v1082, %v1281
        %v1283 = vpop.f32.mrf.mxu0
        %v1284 = vadd.f32 %v1082, %v1283
        %1285 = vmatmul.bf16.gmra.mxu0 %v1061
        %v1286 = vpop.f32.mrf.mxu0
        %v1287 = vadd.f32 %v1082, %v1286
        %v1288 = vpop.f32.mrf.mxu0
        %v1289 = vadd.f32 %v1082, %v1288
        %1290 = vmatmul.bf16.gmra.mxu0 %v1062
        %v1291 = vpop.f32.mrf.mxu0
        %v1292 = vadd.f32 %v1082, %v1291
        %v1293 = vpop.f32.mrf.mxu0
        %v1294 = vadd.f32 %v1082, %v1293
        %1295 = vmatmul.bf16.gmra.mxu0 %v1063
        %v1296 = vpop.f32.mrf.mxu0
        %v1297 = vadd.f32 %v1082, %v1296
        %v1298 = vpop.f32.mrf.mxu0
        %v1299 = vadd.f32 %v1082, %v1298
        %1300 = vdwg.mxu0
        %v1301 = vpack.c.bf16 %v1144, %v1142
        %v1302 = vpack.c.bf16 %v1149, %v1147
        %v1303 = vpack.c.bf16 %v1154, %v1152
        %v1304 = vpack.c.bf16 %v1159, %v1157
        %v1305 = vpack.c.bf16 %v1164, %v1162
        %v1306 = vpack.c.bf16 %v1169, %v1167
        %v1307 = vpack.c.bf16 %v1174, %v1172
        %v1308 = vpack.c.bf16 %v1179, %v1177
        %v1309 = vpack.c.bf16 %v1184, %v1182
        %v1310 = vpack.c.bf16 %v1189, %v1187
        %v1311 = vpack.c.bf16 %v1194, %v1192
        %v1312 = vpack.c.bf16 %v1199, %v1197
        %v1313 = vpack.c.bf16 %v1204, %v1202
        %v1314 = vpack.c.bf16 %v1209, %v1207
        %v1315 = vpack.c.bf16 %v1214, %v1212
        %v1316 = vpack.c.bf16 %v1219, %v1217
        %v1317 = vpack.c.bf16 %v1224, %v1222
        %v1318 = vpack.c.bf16 %v1229, %v1227
        %v1319 = vpack.c.bf16 %v1234, %v1232
        %v1320 = vpack.c.bf16 %v1239, %v1237
        %v1321 = vpack.c.bf16 %v1244, %v1242
        %v1322 = vpack.c.bf16 %v1249, %v1247
        %v1323 = vpack.c.bf16 %v1254, %v1252
        %v1324 = vpack.c.bf16 %v1259, %v1257
        %v1325 = vpack.c.bf16 %v1264, %v1262
        %v1326 = vpack.c.bf16 %v1269, %v1267
        %v1327 = vpack.c.bf16 %v1274, %v1272
        %v1328 = vpack.c.bf16 %v1279, %v1277
        %v1329 = vpack.c.bf16 %v1284, %v1282
        %v1330 = vpack.c.bf16 %v1289, %v1287
        %v1331 = vpack.c.bf16 %v1294, %v1292
        %v1332 = vpack.c.bf16 %v1299, %v1297
        %v1333 = vld [vmem:[%s7] sm:$0xf]
        %v1334 = vld [vmem:[%s7 + $0x4] sm:$0xf]
        %v1335 = vld [vmem:[%s7 + $0x8] sm:$0xf]
        %v1336 = vld [vmem:[%s7 + $0xc] sm:$0xf]
        %v1337 = vld [vmem:[%s7 + $0x10] sm:$0xf]
        %v1338 = vld [vmem:[%s7 + $0x14] sm:$0xf]
        %v1339 = vld [vmem:[%s7 + $0x18] sm:$0xf]
        %v1340 = vld [vmem:[%s7 + $0x1c] sm:$0xf]
        %v1341 = vld [vmem:[%s7 + $0x20] sm:$0xf]
        %v1342 = vld [vmem:[%s7 + $0x24] sm:$0xf]
        %v1343 = vld [vmem:[%s7 + $0x28] sm:$0xf]
        %v1344 = vld [vmem:[%s7 + $0x2c] sm:$0xf]
        %v1345 = vld [vmem:[%s7 + $0x30] sm:$0xf]
        %v1346 = vld [vmem:[%s7 + $0x34] sm:$0xf]
        %v1347 = vld [vmem:[%s7 + $0x38] sm:$0xf]
        %v1348 = vld [vmem:[%s7 + $0x3c] sm:$0xf]
        %v1349 = vld [vmem:[%s459] sm:$0xf]
        %v1350 = vld [vmem:[%s459 + $0x4] sm:$0xf]
        %v1351 = vld [vmem:[%s459 + $0x8] sm:$0xf]
        %v1352 = vld [vmem:[%s459 + $0xc] sm:$0xf]
        %v1353 = vld [vmem:[%s459 + $0x10] sm:$0xf]
        %v1354 = vld [vmem:[%s459 + $0x14] sm:$0xf]
        %v1355 = vld [vmem:[%s459 + $0x18] sm:$0xf]
        %v1356 = vld [vmem:[%s459 + $0x1c] sm:$0xf]
        %v1357 = vld [vmem:[%s459 + $0x20] sm:$0xf]
        %v1358 = vld [vmem:[%s459 + $0x24] sm:$0xf]
        %v1359 = vld [vmem:[%s459 + $0x28] sm:$0xf]
        %v1360 = vld [vmem:[%s459 + $0x2c] sm:$0xf]
        %v1361 = vld [vmem:[%s459 + $0x30] sm:$0xf]
        %v1362 = vld [vmem:[%s459 + $0x34] sm:$0xf]
        %v1363 = vld [vmem:[%s459 + $0x38] sm:$0xf]
        %v1364 = vld [vmem:[%s459 + $0x3c] sm:$0xf]
        %v1365 = vld [vmem:[%s459 + $0x40] sm:$0xf]
        %v1366 = vld [vmem:[%s459 + $0x44] sm:$0xf]
        %v1367 = vld [vmem:[%s459 + $0x48] sm:$0xf]
        %v1368 = vld [vmem:[%s459 + $0x4c] sm:$0xf]
        %v1369 = vld [vmem:[%s459 + $0x50] sm:$0xf]
        %v1370 = vld [vmem:[%s459 + $0x54] sm:$0xf]
        %v1371 = vld [vmem:[%s459 + $0x58] sm:$0xf]
        %v1372 = vld [vmem:[%s459 + $0x5c] sm:$0xf]
        %v1373 = vld [vmem:[%s459 + $0x60] sm:$0xf]
        %v1374 = vld [vmem:[%s459 + $0x64] sm:$0xf]
        %v1375 = vld [vmem:[%s459 + $0x68] sm:$0xf]
        %v1376 = vld [vmem:[%s459 + $0x6c] sm:$0xf]
        %v1377 = vld [vmem:[%s459 + $0x70] sm:$0xf]
        %v1378 = vld [vmem:[%s459 + $0x74] sm:$0xf]
        %v1379 = vld [vmem:[%s459 + $0x78] sm:$0xf]
        %v1380 = vld [vmem:[%s459 + $0x7c] sm:$0xf]
        %v1381 = vld [vmem:[%s459 + $0x80] sm:$0xf]
        %v1382 = vld [vmem:[%s459 + $0x84] sm:$0xf]
        %v1383 = vld [vmem:[%s459 + $0x88] sm:$0xf]
        %v1384 = vld [vmem:[%s459 + $0x8c] sm:$0xf]
        %v1385 = vld [vmem:[%s459 + $0x90] sm:$0xf]
        %v1386 = vld [vmem:[%s459 + $0x94] sm:$0xf]
        %v1387 = vld [vmem:[%s459 + $0x98] sm:$0xf]
        %v1388 = vld [vmem:[%s459 + $0x9c] sm:$0xf]
        %v1389 = vld [vmem:[%s459 + $0xa0] sm:$0xf]
        %v1390 = vld [vmem:[%s459 + $0xa4] sm:$0xf]
        %v1391 = vld [vmem:[%s459 + $0xa8] sm:$0xf]
        %v1392 = vld [vmem:[%s459 + $0xac] sm:$0xf]
        %v1393 = vld [vmem:[%s459 + $0xb0] sm:$0xf]
        %v1394 = vld [vmem:[%s459 + $0xb4] sm:$0xf]
        %v1395 = vld [vmem:[%s459 + $0xb8] sm:$0xf]
        %v1396 = vld [vmem:[%s459 + $0xbc] sm:$0xf]
        %v1397 = vld [vmem:[%s459 + $0xc0] sm:$0xf]
        %v1398 = vld [vmem:[%s459 + $0xc4] sm:$0xf]
        %v1399 = vld [vmem:[%s459 + $0xc8] sm:$0xf]
        %v1400 = vld [vmem:[%s459 + $0xcc] sm:$0xf]
        %v1401 = vld [vmem:[%s459 + $0xd0] sm:$0xf]
        %v1402 = vld [vmem:[%s459 + $0xd4] sm:$0xf]
        %v1403 = vld [vmem:[%s459 + $0xd8] sm:$0xf]
        %v1404 = vld [vmem:[%s459 + $0xdc] sm:$0xf]
        %v1405 = vld [vmem:[%s459 + $0xe0] sm:$0xf]
        %v1406 = vld [vmem:[%s459 + $0xe4] sm:$0xf]
        %v1407 = vld [vmem:[%s459 + $0xe8] sm:$0xf]
        %v1408 = vld [vmem:[%s459 + $0xec] sm:$0xf]
        %v1409 = vld [vmem:[%s459 + $0xf0] sm:$0xf]
        %v1410 = vld [vmem:[%s459 + $0xf4] sm:$0xf]
        %v1411 = vld [vmem:[%s459 + $0xf8] sm:$0xf]
        %v1412 = vld [vmem:[%s459 + $0xfc] sm:$0xf]
        %v1413 = vld [vmem:[%s8] sm:$0xf]
        %v1478 = vunpack.c.l.b16 %v1349
        %v1479 = vunpack.c.l.b16 %v1350
        %v1480 = vunpack.c.l.b16 %v1351
        %v1481 = vunpack.c.l.b16 %v1352
        %v1482 = vunpack.c.l.b16 %v1353
        %v1483 = vunpack.c.l.b16 %v1354
        %v1484 = vunpack.c.l.b16 %v1355
        %v1485 = vunpack.c.l.b16 %v1356
        %v1486 = vunpack.c.l.b16 %v1357
        %v1487 = vunpack.c.l.b16 %v1358
        %v1488 = vunpack.c.l.b16 %v1359
        %v1489 = vunpack.c.l.b16 %v1360
        %v1490 = vunpack.c.l.b16 %v1361
        %v1491 = vunpack.c.l.b16 %v1362
        %v1492 = vunpack.c.l.b16 %v1363
        %v1493 = vunpack.c.l.b16 %v1364
        %v1494 = vunpack.c.l.b16 %v1365
        %v1495 = vunpack.c.l.b16 %v1366
        %v1496 = vunpack.c.l.b16 %v1367
        %v1497 = vunpack.c.l.b16 %v1368
        %v1498 = vunpack.c.l.b16 %v1369
        %v1499 = vunpack.c.l.b16 %v1370
        %v1500 = vunpack.c.l.b16 %v1371
        %v1501 = vunpack.c.l.b16 %v1372
        %v1502 = vunpack.c.l.b16 %v1373
        %v1503 = vunpack.c.l.b16 %v1374
        %v1504 = vunpack.c.l.b16 %v1375
        %v1505 = vunpack.c.l.b16 %v1376
        %v1506 = vunpack.c.l.b16 %v1377
        %v1507 = vunpack.c.l.b16 %v1378
        %v1508 = vunpack.c.l.b16 %v1379
        %v1509 = vunpack.c.l.b16 %v1380
        %v1510 = vunpack.c.l.b16 %v1381
        %v1511 = vunpack.c.l.b16 %v1382
        %v1512 = vunpack.c.l.b16 %v1383
        %v1513 = vunpack.c.l.b16 %v1384
        %v1514 = vunpack.c.l.b16 %v1385
        %v1515 = vunpack.c.l.b16 %v1386
        %v1516 = vunpack.c.l.b16 %v1387
        %v1517 = vunpack.c.l.b16 %v1388
        %v1518 = vunpack.c.l.b16 %v1389
        %v1519 = vunpack.c.l.b16 %v1390
        %v1520 = vunpack.c.l.b16 %v1391
        %v1521 = vunpack.c.l.b16 %v1392
        %v1522 = vunpack.c.l.b16 %v1393
        %v1523 = vunpack.c.l.b16 %v1394
        %v1524 = vunpack.c.l.b16 %v1395
        %v1525 = vunpack.c.l.b16 %v1396
        %v1526 = vunpack.c.l.b16 %v1397
        %v1527 = vunpack.c.l.b16 %v1398
        %v1528 = vunpack.c.l.b16 %v1399
        %v1529 = vunpack.c.l.b16 %v1400
        %v1530 = vunpack.c.l.b16 %v1401
        %v1531 = vunpack.c.l.b16 %v1402
        %v1532 = vunpack.c.l.b16 %v1403
        %v1533 = vunpack.c.l.b16 %v1404
        %v1534 = vunpack.c.l.b16 %v1405
        %v1535 = vunpack.c.l.b16 %v1406
        %v1536 = vunpack.c.l.b16 %v1407
        %v1537 = vunpack.c.l.b16 %v1408
        %v1538 = vunpack.c.l.b16 %v1409
        %v1539 = vunpack.c.l.b16 %v1410
        %v1540 = vunpack.c.l.b16 %v1411
        %v1541 = vunpack.c.l.b16 %v1412
        %v1542 = vpack.c.b16 %v1479, %v1478
        %v1543 = vpack.c.b16 %v1481, %v1480
        %v1544 = vpack.c.b16 %v1483, %v1482
        %v1545 = vpack.c.b16 %v1485, %v1484
        %v1546 = vpack.c.b16 %v1487, %v1486
        %v1547 = vpack.c.b16 %v1489, %v1488
        %v1548 = vpack.c.b16 %v1491, %v1490
        %v1549 = vpack.c.b16 %v1493, %v1492
        %v1550 = vpack.c.b16 %v1495, %v1494
        %v1551 = vpack.c.b16 %v1497, %v1496
        %v1552 = vpack.c.b16 %v1499, %v1498
        %v1553 = vpack.c.b16 %v1501, %v1500
        %v1554 = vpack.c.b16 %v1503, %v1502
        %v1555 = vpack.c.b16 %v1505, %v1504
        %v1556 = vpack.c.b16 %v1507, %v1506
        %v1557 = vpack.c.b16 %v1509, %v1508
        %v1558 = vpack.c.b16 %v1511, %v1510
        %v1559 = vpack.c.b16 %v1513, %v1512
        %v1560 = vpack.c.b16 %v1515, %v1514
        %v1561 = vpack.c.b16 %v1517, %v1516
        %v1562 = vpack.c.b16 %v1519, %v1518
        %v1563 = vpack.c.b16 %v1521, %v1520
        %v1564 = vpack.c.b16 %v1523, %v1522
        %v1565 = vpack.c.b16 %v1525, %v1524
        %v1566 = vpack.c.b16 %v1527, %v1526
        %v1567 = vpack.c.b16 %v1529, %v1528
        %v1568 = vpack.c.b16 %v1531, %v1530
        %v1569 = vpack.c.b16 %v1533, %v1532
        %v1570 = vpack.c.b16 %v1535, %v1534
        %v1571 = vpack.c.b16 %v1537, %v1536
        %v1572 = vpack.c.b16 %v1539, %v1538
        %v1573 = vpack.c.b16 %v1541, %v1540
        %v1575 = vsel %vm698, %v1542, 0
        %v1578 = vsel %vm698, %v1543, 0
        %v1581 = vsel %vm698, %v1544, 0
        %v1584 = vsel %vm698, %v1545, 0
        %v1587 = vsel %vm698, %v1546, 0
        %v1590 = vsel %vm698, %v1547, 0
        %v1593 = vsel %vm698, %v1548, 0
        %v1596 = vsel %vm698, %v1549, 0
        %v1599 = vsel %vm698, %v1550, 0
        %v1602 = vsel %vm698, %v1551, 0
        %v1605 = vsel %vm698, %v1552, 0
        %v1608 = vsel %vm698, %v1553, 0
        %v1611 = vsel %vm698, %v1554, 0
        %v1614 = vsel %vm698, %v1555, 0
        %v1617 = vsel %vm698, %v1556, 0
        %v1620 = vsel %vm698, %v1557, 0
        %v1623 = vsel %vm698, %v1558, 0
        %v1626 = vsel %vm698, %v1559, 0
        %v1629 = vsel %vm698, %v1560, 0
        %v1632 = vsel %vm698, %v1561, 0
        %v1635 = vsel %vm698, %v1562, 0
        %v1638 = vsel %vm698, %v1563, 0
        %v1641 = vsel %vm698, %v1564, 0
        %v1644 = vsel %vm698, %v1565, 0
        %v1647 = vsel %vm698, %v1566, 0
        %v1650 = vsel %vm698, %v1567, 0
        %v1653 = vsel %vm698, %v1568, 0
        %v1656 = vsel %vm698, %v1569, 0
        %v1659 = vsel %vm698, %v1570, 0
        %v1662 = vsel %vm698, %v1571, 0
        %v1665 = vsel %vm698, %v1572, 0
        %v1668 = vsel %vm698, %v1573, 0
        %v1671 = vsel %vm795, %v1413, 0
        %1673 = vmatpush.bf16.msra.mxu0 0
        %1674 = vmatpush.bf16.msra.mxu0 0
        %1675 = vmatpush.bf16.msra.mxu0 0
        %1676 = vmatpush.bf16.msra.mxu0 0
        %1677 = vmatpush.bf16.msra.mxu0 0
        %1678 = vmatpush.bf16.msra.mxu0 0
        %1679 = vmatpush.bf16.msra.mxu0 0
        %1680 = vmatpush.bf16.msra.mxu0 %v1671
        %1681 = vmatmul.bf16.gmra.mxu0 %v1575
        %v1682 = vpop.f32.mrf.mxu0
        %v1683 = vadd.f32 0.0, %v1682
        %v1684 = vpop.f32.mrf.mxu0
        %v1685 = vadd.f32 0.0, %v1684
        %1686 = vmatmul.bf16.gmra.mxu0 %v1578
        %v1687 = vpop.f32.mrf.mxu0
        %v1688 = vadd.f32 0.0, %v1687
        %v1689 = vpop.f32.mrf.mxu0
        %v1690 = vadd.f32 0.0, %v1689
        %1691 = vmatmul.bf16.gmra.mxu0 %v1581
        %v1692 = vpop.f32.mrf.mxu0
        %v1693 = vadd.f32 0.0, %v1692
        %v1694 = vpop.f32.mrf.mxu0
        %v1695 = vadd.f32 0.0, %v1694
        %1696 = vmatmul.bf16.gmra.mxu0 %v1584
        %v1697 = vpop.f32.mrf.mxu0
        %v1698 = vadd.f32 0.0, %v1697
        %v1699 = vpop.f32.mrf.mxu0
        %v1700 = vadd.f32 0.0, %v1699
        %1701 = vmatmul.bf16.gmra.mxu0 %v1587
        %v1702 = vpop.f32.mrf.mxu0
        %v1703 = vadd.f32 0.0, %v1702
        %v1704 = vpop.f32.mrf.mxu0
        %v1705 = vadd.f32 0.0, %v1704
        %1706 = vmatmul.bf16.gmra.mxu0 %v1590
        %v1707 = vpop.f32.mrf.mxu0
        %v1708 = vadd.f32 0.0, %v1707
        %v1709 = vpop.f32.mrf.mxu0
        %v1710 = vadd.f32 0.0, %v1709
        %1711 = vmatmul.bf16.gmra.mxu0 %v1593
        %v1712 = vpop.f32.mrf.mxu0
        %v1713 = vadd.f32 0.0, %v1712
        %v1714 = vpop.f32.mrf.mxu0
        %v1715 = vadd.f32 0.0, %v1714
        %1716 = vmatmul.bf16.gmra.mxu0 %v1596
        %v1717 = vpop.f32.mrf.mxu0
        %v1718 = vadd.f32 0.0, %v1717
        %v1719 = vpop.f32.mrf.mxu0
        %v1720 = vadd.f32 0.0, %v1719
        %1721 = vmatmul.bf16.gmra.mxu0 %v1599
        %v1722 = vpop.f32.mrf.mxu0
        %v1723 = vadd.f32 0.0, %v1722
        %v1724 = vpop.f32.mrf.mxu0
        %v1725 = vadd.f32 0.0, %v1724
        %1726 = vmatmul.bf16.gmra.mxu0 %v1602
        %v1727 = vpop.f32.mrf.mxu0
        %v1728 = vadd.f32 0.0, %v1727
        %v1729 = vpop.f32.mrf.mxu0
        %v1730 = vadd.f32 0.0, %v1729
        %1731 = vmatmul.bf16.gmra.mxu0 %v1605
        %v1732 = vpop.f32.mrf.mxu0
        %v1733 = vadd.f32 0.0, %v1732
        %v1734 = vpop.f32.mrf.mxu0
        %v1735 = vadd.f32 0.0, %v1734
        %1736 = vmatmul.bf16.gmra.mxu0 %v1608
        %v1737 = vpop.f32.mrf.mxu0
        %v1738 = vadd.f32 0.0, %v1737
        %v1739 = vpop.f32.mrf.mxu0
        %v1740 = vadd.f32 0.0, %v1739
        %1741 = vmatmul.bf16.gmra.mxu0 %v1611
        %v1742 = vpop.f32.mrf.mxu0
        %v1743 = vadd.f32 0.0, %v1742
        %v1744 = vpop.f32.mrf.mxu0
        %v1745 = vadd.f32 0.0, %v1744
        %1746 = vmatmul.bf16.gmra.mxu0 %v1614
        %v1747 = vpop.f32.mrf.mxu0
        %v1748 = vadd.f32 0.0, %v1747
        %v1749 = vpop.f32.mrf.mxu0
        %v1750 = vadd.f32 0.0, %v1749
        %1751 = vmatmul.bf16.gmra.mxu0 %v1617
        %v1752 = vpop.f32.mrf.mxu0
        %v1753 = vadd.f32 0.0, %v1752
        %v1754 = vpop.f32.mrf.mxu0
        %v1755 = vadd.f32 0.0, %v1754
        %1756 = vmatmul.bf16.gmra.mxu0 %v1620
        %v1757 = vpop.f32.mrf.mxu0
        %v1758 = vadd.f32 0.0, %v1757
        %v1759 = vpop.f32.mrf.mxu0
        %v1760 = vadd.f32 0.0, %v1759
        %1761 = vmatmul.bf16.gmra.mxu0 %v1623
        %v1762 = vpop.f32.mrf.mxu0
        %v1763 = vadd.f32 0.0, %v1762
        %v1764 = vpop.f32.mrf.mxu0
        %v1765 = vadd.f32 0.0, %v1764
        %1766 = vmatmul.bf16.gmra.mxu0 %v1626
        %v1767 = vpop.f32.mrf.mxu0
        %v1768 = vadd.f32 0.0, %v1767
        %v1769 = vpop.f32.mrf.mxu0
        %v1770 = vadd.f32 0.0, %v1769
        %1771 = vmatmul.bf16.gmra.mxu0 %v1629
        %v1772 = vpop.f32.mrf.mxu0
        %v1773 = vadd.f32 0.0, %v1772
        %v1774 = vpop.f32.mrf.mxu0
        %v1775 = vadd.f32 0.0, %v1774
        %1776 = vmatmul.bf16.gmra.mxu0 %v1632
        %v1777 = vpop.f32.mrf.mxu0
        %v1778 = vadd.f32 0.0, %v1777
        %v1779 = vpop.f32.mrf.mxu0
        %v1780 = vadd.f32 0.0, %v1779
        %1781 = vmatmul.bf16.gmra.mxu0 %v1635
        %v1782 = vpop.f32.mrf.mxu0
        %v1783 = vadd.f32 0.0, %v1782
        %v1784 = vpop.f32.mrf.mxu0
        %v1785 = vadd.f32 0.0, %v1784
        %1786 = vmatmul.bf16.gmra.mxu0 %v1638
        %v1787 = vpop.f32.mrf.mxu0
        %v1788 = vadd.f32 0.0, %v1787
        %v1789 = vpop.f32.mrf.mxu0
        %v1790 = vadd.f32 0.0, %v1789
        %1791 = vmatmul.bf16.gmra.mxu0 %v1641
        %v1792 = vpop.f32.mrf.mxu0
        %v1793 = vadd.f32 0.0, %v1792
        %v1794 = vpop.f32.mrf.mxu0
        %v1795 = vadd.f32 0.0, %v1794
        %1796 = vmatmul.bf16.gmra.mxu0 %v1644
        %v1797 = vpop.f32.mrf.mxu0
        %v1798 = vadd.f32 0.0, %v1797
        %v1799 = vpop.f32.mrf.mxu0
        %v1800 = vadd.f32 0.0, %v1799
        %1801 = vmatmul.bf16.gmra.mxu0 %v1647
        %v1802 = vpop.f32.mrf.mxu0
        %v1803 = vadd.f32 0.0, %v1802
        %v1804 = vpop.f32.mrf.mxu0
        %v1805 = vadd.f32 0.0, %v1804
        %1806 = vmatmul.bf16.gmra.mxu0 %v1650
        %v1807 = vpop.f32.mrf.mxu0
        %v1808 = vadd.f32 0.0, %v1807
        %v1809 = vpop.f32.mrf.mxu0
        %v1810 = vadd.f32 0.0, %v1809
        %1811 = vmatmul.bf16.gmra.mxu0 %v1653
        %v1812 = vpop.f32.mrf.mxu0
        %v1813 = vadd.f32 0.0, %v1812
        %v1814 = vpop.f32.mrf.mxu0
        %v1815 = vadd.f32 0.0, %v1814
        %1816 = vmatmul.bf16.gmra.mxu0 %v1656
        %v1817 = vpop.f32.mrf.mxu0
        %v1818 = vadd.f32 0.0, %v1817
        %v1819 = vpop.f32.mrf.mxu0
        %v1820 = vadd.f32 0.0, %v1819
        %1821 = vmatmul.bf16.gmra.mxu0 %v1659
        %v1822 = vpop.f32.mrf.mxu0
        %v1823 = vadd.f32 0.0, %v1822
        %v1824 = vpop.f32.mrf.mxu0
        %v1825 = vadd.f32 0.0, %v1824
        %1826 = vmatmul.bf16.gmra.mxu0 %v1662
        %v1827 = vpop.f32.mrf.mxu0
        %v1828 = vadd.f32 0.0, %v1827
        %v1829 = vpop.f32.mrf.mxu0
        %v1830 = vadd.f32 0.0, %v1829
        %1831 = vmatmul.bf16.gmra.mxu0 %v1665
        %v1832 = vpop.f32.mrf.mxu0
        %v1833 = vadd.f32 0.0, %v1832
        %v1834 = vpop.f32.mrf.mxu0
        %v1835 = vadd.f32 0.0, %v1834
        %1836 = vmatmul.bf16.gmra.mxu0 %v1668
        %v1837 = vpop.f32.mrf.mxu0
        %v1838 = vadd.f32 0.0, %v1837
        %v1839 = vpop.f32.mrf.mxu0
        %v1840 = vadd.f32 0.0, %v1839
        %1841 = vdwg.mxu0
        %v1858 = vunpack.c.l.b16 %v1333
        %v1859 = vunpack.c.l.b16 %v1334
        %v1860 = vunpack.c.l.b16 %v1335
        %v1861 = vunpack.c.l.b16 %v1336
        %v1862 = vunpack.c.l.b16 %v1337
        %v1863 = vunpack.c.l.b16 %v1338
        %v1864 = vunpack.c.l.b16 %v1339
        %v1865 = vunpack.c.l.b16 %v1340
        %v1866 = vunpack.c.l.b16 %v1341
        %v1867 = vunpack.c.l.b16 %v1342
        %v1868 = vunpack.c.l.b16 %v1343
        %v1869 = vunpack.c.l.b16 %v1344
        %v1870 = vunpack.c.l.b16 %v1345
        %v1871 = vunpack.c.l.b16 %v1346
        %v1872 = vunpack.c.l.b16 %v1347
        %v1873 = vunpack.c.l.b16 %v1348
        %v1874 = vpack.c.b16 %v1859, %v1858
        %v1875 = vpack.c.b16 %v1861, %v1860
        %v1876 = vpack.c.b16 %v1863, %v1862
        %v1877 = vpack.c.b16 %v1865, %v1864
        %v1878 = vpack.c.b16 %v1867, %v1866
        %v1879 = vpack.c.b16 %v1869, %v1868
        %v1880 = vpack.c.b16 %v1871, %v1870
        %v1881 = vpack.c.b16 %v1873, %v1872
        %1890 = vmatpush.bf16.msra.mxu0 %v1881
        %1891 = vmatpush.bf16.msra.mxu0 %v1880
        %1892 = vmatpush.bf16.msra.mxu0 %v1879
        %1893 = vmatpush.bf16.msra.mxu0 %v1878
        %1894 = vmatpush.bf16.msra.mxu0 %v1877
        %1895 = vmatpush.bf16.msra.mxu0 %v1876
        %1896 = vmatpush.bf16.msra.mxu0 %v1875
        %1897 = vmatpush.bf16.msra.mxu0 %v1874
        %1898 = vmatmul.bf16.gmra.mxu0 %v1301
        %v1899 = vpop.f32.mrf.mxu0
        %v1900 = vadd.f32 %v1683, %v1899
        %v1901 = vpop.f32.mrf.mxu0
        %v1902 = vadd.f32 %v1685, %v1901
        %1903 = vmatmul.bf16.gmra.mxu0 %v1302
        %v1904 = vpop.f32.mrf.mxu0
        %v1905 = vadd.f32 %v1688, %v1904
        %v1906 = vpop.f32.mrf.mxu0
        %v1907 = vadd.f32 %v1690, %v1906
        %1908 = vmatmul.bf16.gmra.mxu0 %v1303
        %v1909 = vpop.f32.mrf.mxu0
        %v1910 = vadd.f32 %v1693, %v1909
        %v1911 = vpop.f32.mrf.mxu0
        %v1912 = vadd.f32 %v1695, %v1911
        %1913 = vmatmul.bf16.gmra.mxu0 %v1304
        %v1914 = vpop.f32.mrf.mxu0
        %v1915 = vadd.f32 %v1698, %v1914
        %v1916 = vpop.f32.mrf.mxu0
        %v1917 = vadd.f32 %v1700, %v1916
        %1918 = vmatmul.bf16.gmra.mxu0 %v1305
        %v1919 = vpop.f32.mrf.mxu0
        %v1920 = vadd.f32 %v1703, %v1919
        %v1921 = vpop.f32.mrf.mxu0
        %v1922 = vadd.f32 %v1705, %v1921
        %1923 = vmatmul.bf16.gmra.mxu0 %v1306
        %v1924 = vpop.f32.mrf.mxu0
        %v1925 = vadd.f32 %v1708, %v1924
        %v1926 = vpop.f32.mrf.mxu0
        %v1927 = vadd.f32 %v1710, %v1926
        %1928 = vmatmul.bf16.gmra.mxu0 %v1307
        %v1929 = vpop.f32.mrf.mxu0
        %v1930 = vadd.f32 %v1713, %v1929
        %v1931 = vpop.f32.mrf.mxu0
        %v1932 = vadd.f32 %v1715, %v1931
        %1933 = vmatmul.bf16.gmra.mxu0 %v1308
        %v1934 = vpop.f32.mrf.mxu0
        %v1935 = vadd.f32 %v1718, %v1934
        %v1936 = vpop.f32.mrf.mxu0
        %v1937 = vadd.f32 %v1720, %v1936
        %1938 = vmatmul.bf16.gmra.mxu0 %v1309
        %v1939 = vpop.f32.mrf.mxu0
        %v1940 = vadd.f32 %v1723, %v1939
        %v1941 = vpop.f32.mrf.mxu0
        %v1942 = vadd.f32 %v1725, %v1941
        %1943 = vmatmul.bf16.gmra.mxu0 %v1310
        %v1944 = vpop.f32.mrf.mxu0
        %v1945 = vadd.f32 %v1728, %v1944
        %v1946 = vpop.f32.mrf.mxu0
        %v1947 = vadd.f32 %v1730, %v1946
        %1948 = vmatmul.bf16.gmra.mxu0 %v1311
        %v1949 = vpop.f32.mrf.mxu0
        %v1950 = vadd.f32 %v1733, %v1949
        %v1951 = vpop.f32.mrf.mxu0
        %v1952 = vadd.f32 %v1735, %v1951
        %1953 = vmatmul.bf16.gmra.mxu0 %v1312
        %v1954 = vpop.f32.mrf.mxu0
        %v1955 = vadd.f32 %v1738, %v1954
        %v1956 = vpop.f32.mrf.mxu0
        %v1957 = vadd.f32 %v1740, %v1956
        %1958 = vmatmul.bf16.gmra.mxu0 %v1313
        %v1959 = vpop.f32.mrf.mxu0
        %v1960 = vadd.f32 %v1743, %v1959
        %v1961 = vpop.f32.mrf.mxu0
        %v1962 = vadd.f32 %v1745, %v1961
        %1963 = vmatmul.bf16.gmra.mxu0 %v1314
        %v1964 = vpop.f32.mrf.mxu0
        %v1965 = vadd.f32 %v1748, %v1964
        %v1966 = vpop.f32.mrf.mxu0
        %v1967 = vadd.f32 %v1750, %v1966
        %1968 = vmatmul.bf16.gmra.mxu0 %v1315
        %v1969 = vpop.f32.mrf.mxu0
        %v1970 = vadd.f32 %v1753, %v1969
        %v1971 = vpop.f32.mrf.mxu0
        %v1972 = vadd.f32 %v1755, %v1971
        %1973 = vmatmul.bf16.gmra.mxu0 %v1316
        %v1974 = vpop.f32.mrf.mxu0
        %v1975 = vadd.f32 %v1758, %v1974
        %v1976 = vpop.f32.mrf.mxu0
        %v1977 = vadd.f32 %v1760, %v1976
        %1978 = vmatmul.bf16.gmra.mxu0 %v1317
        %v1979 = vpop.f32.mrf.mxu0
        %v1980 = vadd.f32 %v1763, %v1979
        %v1981 = vpop.f32.mrf.mxu0
        %v1982 = vadd.f32 %v1765, %v1981
        %1983 = vmatmul.bf16.gmra.mxu0 %v1318
        %v1984 = vpop.f32.mrf.mxu0
        %v1985 = vadd.f32 %v1768, %v1984
        %v1986 = vpop.f32.mrf.mxu0
        %v1987 = vadd.f32 %v1770, %v1986
        %1988 = vmatmul.bf16.gmra.mxu0 %v1319
        %v1989 = vpop.f32.mrf.mxu0
        %v1990 = vadd.f32 %v1773, %v1989
        %v1991 = vpop.f32.mrf.mxu0
        %v1992 = vadd.f32 %v1775, %v1991
        %1993 = vmatmul.bf16.gmra.mxu0 %v1320
        %v1994 = vpop.f32.mrf.mxu0
        %v1995 = vadd.f32 %v1778, %v1994
        %v1996 = vpop.f32.mrf.mxu0
        %v1997 = vadd.f32 %v1780, %v1996
        %1998 = vmatmul.bf16.gmra.mxu0 %v1321
        %v1999 = vpop.f32.mrf.mxu0
        %v2000 = vadd.f32 %v1783, %v1999
        %v2001 = vpop.f32.mrf.mxu0
        %v2002 = vadd.f32 %v1785, %v2001
        %2003 = vmatmul.bf16.gmra.mxu0 %v1322
        %v2004 = vpop.f32.mrf.mxu0
        %v2005 = vadd.f32 %v1788, %v2004
        %v2006 = vpop.f32.mrf.mxu0
        %v2007 = vadd.f32 %v1790, %v2006
        %2008 = vmatmul.bf16.gmra.mxu0 %v1323
        %v2009 = vpop.f32.mrf.mxu0
        %v2010 = vadd.f32 %v1793, %v2009
        %v2011 = vpop.f32.mrf.mxu0
        %v2012 = vadd.f32 %v1795, %v2011
        %2013 = vmatmul.bf16.gmra.mxu0 %v1324
        %v2014 = vpop.f32.mrf.mxu0
        %v2015 = vadd.f32 %v1798, %v2014
        %v2016 = vpop.f32.mrf.mxu0
        %v2017 = vadd.f32 %v1800, %v2016
        %2018 = vmatmul.bf16.gmra.mxu0 %v1325
        %v2019 = vpop.f32.mrf.mxu0
        %v2020 = vadd.f32 %v1803, %v2019
        %v2021 = vpop.f32.mrf.mxu0
        %v2022 = vadd.f32 %v1805, %v2021
        %2023 = vmatmul.bf16.gmra.mxu0 %v1326
        %v2024 = vpop.f32.mrf.mxu0
        %v2025 = vadd.f32 %v1808, %v2024
        %v2026 = vpop.f32.mrf.mxu0
        %v2027 = vadd.f32 %v1810, %v2026
        %2028 = vmatmul.bf16.gmra.mxu0 %v1327
        %v2029 = vpop.f32.mrf.mxu0
        %v2030 = vadd.f32 %v1813, %v2029
        %v2031 = vpop.f32.mrf.mxu0
        %v2032 = vadd.f32 %v1815, %v2031
        %2033 = vmatmul.bf16.gmra.mxu0 %v1328
        %v2034 = vpop.f32.mrf.mxu0
        %v2035 = vadd.f32 %v1818, %v2034
        %v2036 = vpop.f32.mrf.mxu0
        %v2037 = vadd.f32 %v1820, %v2036
        %2038 = vmatmul.bf16.gmra.mxu0 %v1329
        %v2039 = vpop.f32.mrf.mxu0
        %v2040 = vadd.f32 %v1823, %v2039
        %v2041 = vpop.f32.mrf.mxu0
        %v2042 = vadd.f32 %v1825, %v2041
        %2043 = vmatmul.bf16.gmra.mxu0 %v1330
        %v2044 = vpop.f32.mrf.mxu0
        %v2045 = vadd.f32 %v1828, %v2044
        %v2046 = vpop.f32.mrf.mxu0
        %v2047 = vadd.f32 %v1830, %v2046
        %2048 = vmatmul.bf16.gmra.mxu0 %v1331
        %v2049 = vpop.f32.mrf.mxu0
        %v2050 = vadd.f32 %v1833, %v2049
        %v2051 = vpop.f32.mrf.mxu0
        %v2052 = vadd.f32 %v1835, %v2051
        %2053 = vmatmul.bf16.gmra.mxu0 %v1332
        %v2054 = vpop.f32.mrf.mxu0
        %v2055 = vadd.f32 %v1838, %v2054
        %v2056 = vpop.f32.mrf.mxu0
        %v2057 = vadd.f32 %v1840, %v2056
        %2058 = vdwg.mxu0
        %v2059 = vld [vmem:[%s9] sm:$0x1]
        %v2061 = vperm.slane %v2059, 0
        %v2063 = vadd.f32 %v1900, %v2061
        %v2064 = vadd.f32 %v1902, %v2061
        %v2065 = vadd.f32 %v1905, %v2061
        %v2066 = vadd.f32 %v1907, %v2061
        %v2067 = vadd.f32 %v1910, %v2061
        %v2068 = vadd.f32 %v1912, %v2061
        %v2069 = vadd.f32 %v1915, %v2061
        %v2070 = vadd.f32 %v1917, %v2061
        %v2071 = vadd.f32 %v1920, %v2061
        %v2072 = vadd.f32 %v1922, %v2061
        %v2073 = vadd.f32 %v1925, %v2061
        %v2074 = vadd.f32 %v1927, %v2061
        %v2075 = vadd.f32 %v1930, %v2061
        %v2076 = vadd.f32 %v1932, %v2061
        %v2077 = vadd.f32 %v1935, %v2061
        %v2078 = vadd.f32 %v1937, %v2061
        %v2079 = vadd.f32 %v1940, %v2061
        %v2080 = vadd.f32 %v1942, %v2061
        %v2081 = vadd.f32 %v1945, %v2061
        %v2082 = vadd.f32 %v1947, %v2061
        %v2083 = vadd.f32 %v1950, %v2061
        %v2084 = vadd.f32 %v1952, %v2061
        %v2085 = vadd.f32 %v1955, %v2061
        %v2086 = vadd.f32 %v1957, %v2061
        %v2087 = vadd.f32 %v1960, %v2061
        %v2088 = vadd.f32 %v1962, %v2061
        %v2089 = vadd.f32 %v1965, %v2061
        %v2090 = vadd.f32 %v1967, %v2061
        %v2091 = vadd.f32 %v1970, %v2061
        %v2092 = vadd.f32 %v1972, %v2061
        %v2093 = vadd.f32 %v1975, %v2061
        %v2094 = vadd.f32 %v1977, %v2061
        %v2095 = vadd.f32 %v1980, %v2061
        %v2096 = vadd.f32 %v1982, %v2061
        %v2097 = vadd.f32 %v1985, %v2061
        %v2098 = vadd.f32 %v1987, %v2061
        %v2099 = vadd.f32 %v1990, %v2061
        %v2100 = vadd.f32 %v1992, %v2061
        %v2101 = vadd.f32 %v1995, %v2061
        %v2102 = vadd.f32 %v1997, %v2061
        %v2103 = vadd.f32 %v2000, %v2061
        %v2104 = vadd.f32 %v2002, %v2061
        %v2105 = vadd.f32 %v2005, %v2061
        %v2106 = vadd.f32 %v2007, %v2061
        %v2107 = vadd.f32 %v2010, %v2061
        %v2108 = vadd.f32 %v2012, %v2061
        %v2109 = vadd.f32 %v2015, %v2061
        %v2110 = vadd.f32 %v2017, %v2061
        %v2111 = vadd.f32 %v2020, %v2061
        %v2112 = vadd.f32 %v2022, %v2061
        %v2113 = vadd.f32 %v2025, %v2061
        %v2114 = vadd.f32 %v2027, %v2061
        %v2115 = vadd.f32 %v2030, %v2061
        %v2116 = vadd.f32 %v2032, %v2061
        %v2117 = vadd.f32 %v2035, %v2061
        %v2118 = vadd.f32 %v2037, %v2061
        %v2119 = vadd.f32 %v2040, %v2061
        %v2120 = vadd.f32 %v2042, %v2061
        %v2121 = vadd.f32 %v2045, %v2061
        %v2122 = vadd.f32 %v2047, %v2061
        %v2123 = vadd.f32 %v2050, %v2061
        %v2124 = vadd.f32 %v2052, %v2061
        %v2125 = vadd.f32 %v2055, %v2061
        %v2126 = vadd.f32 %v2057, %v2061
        %v2127 = vmax.f32 %v2063, 0.0
        %v2128 = vmax.f32 %v2064, 0.0
        %v2129 = vmax.f32 %v2065, 0.0
        %v2130 = vmax.f32 %v2066, 0.0
        %v2131 = vmax.f32 %v2067, 0.0
        %v2132 = vmax.f32 %v2068, 0.0
        %v2133 = vmax.f32 %v2069, 0.0
        %v2134 = vmax.f32 %v2070, 0.0
        %v2135 = vmax.f32 %v2071, 0.0
        %v2136 = vmax.f32 %v2072, 0.0
        %v2137 = vmax.f32 %v2073, 0.0
        %v2138 = vmax.f32 %v2074, 0.0
        %v2139 = vmax.f32 %v2075, 0.0
        %v2140 = vmax.f32 %v2076, 0.0
        %v2141 = vmax.f32 %v2077, 0.0
        %v2142 = vmax.f32 %v2078, 0.0
        %v2143 = vmax.f32 %v2079, 0.0
        %v2144 = vmax.f32 %v2080, 0.0
        %v2145 = vmax.f32 %v2081, 0.0
        %v2146 = vmax.f32 %v2082, 0.0
        %v2147 = vmax.f32 %v2083, 0.0
        %v2148 = vmax.f32 %v2084, 0.0
        %v2149 = vmax.f32 %v2085, 0.0
        %v2150 = vmax.f32 %v2086, 0.0
        %v2151 = vmax.f32 %v2087, 0.0
        %v2152 = vmax.f32 %v2088, 0.0
        %v2153 = vmax.f32 %v2089, 0.0
        %v2154 = vmax.f32 %v2090, 0.0
        %v2155 = vmax.f32 %v2091, 0.0
        %v2156 = vmax.f32 %v2092, 0.0
        %v2157 = vmax.f32 %v2093, 0.0
        %v2158 = vmax.f32 %v2094, 0.0
        %v2159 = vmax.f32 %v2095, 0.0
        %v2160 = vmax.f32 %v2096, 0.0
        %v2161 = vmax.f32 %v2097, 0.0
        %v2162 = vmax.f32 %v2098, 0.0
        %v2163 = vmax.f32 %v2099, 0.0
        %v2164 = vmax.f32 %v2100, 0.0
        %v2165 = vmax.f32 %v2101, 0.0
        %v2166 = vmax.f32 %v2102, 0.0
        %v2167 = vmax.f32 %v2103, 0.0
        %v2168 = vmax.f32 %v2104, 0.0
        %v2169 = vmax.f32 %v2105, 0.0
        %v2170 = vmax.f32 %v2106, 0.0
        %v2171 = vmax.f32 %v2107, 0.0
        %v2172 = vmax.f32 %v2108, 0.0
        %v2173 = vmax.f32 %v2109, 0.0
        %v2174 = vmax.f32 %v2110, 0.0
        %v2175 = vmax.f32 %v2111, 0.0
        %v2176 = vmax.f32 %v2112, 0.0
        %v2177 = vmax.f32 %v2113, 0.0
        %v2178 = vmax.f32 %v2114, 0.0
        %v2179 = vmax.f32 %v2115, 0.0
        %v2180 = vmax.f32 %v2116, 0.0
        %v2181 = vmax.f32 %v2117, 0.0
        %v2182 = vmax.f32 %v2118, 0.0
        %v2183 = vmax.f32 %v2119, 0.0
        %v2184 = vmax.f32 %v2120, 0.0
        %v2185 = vmax.f32 %v2121, 0.0
        %v2186 = vmax.f32 %v2122, 0.0
        %v2187 = vmax.f32 %v2123, 0.0
        %v2188 = vmax.f32 %v2124, 0.0
        %v2189 = vmax.f32 %v2125, 0.0
        %v2190 = vmax.f32 %v2126, 0.0
        %v2191 = vpack.c.bf16 %v2128, %v2127
        %v2192 = vpack.c.bf16 %v2130, %v2129
        %v2193 = vpack.c.bf16 %v2132, %v2131
        %v2194 = vpack.c.bf16 %v2134, %v2133
        %v2195 = vpack.c.bf16 %v2136, %v2135
        %v2196 = vpack.c.bf16 %v2138, %v2137
        %v2197 = vpack.c.bf16 %v2140, %v2139
        %v2198 = vpack.c.bf16 %v2142, %v2141
        %v2199 = vpack.c.bf16 %v2144, %v2143
        %v2200 = vpack.c.bf16 %v2146, %v2145
        %v2201 = vpack.c.bf16 %v2148, %v2147
        %v2202 = vpack.c.bf16 %v2150, %v2149
        %v2203 = vpack.c.bf16 %v2152, %v2151
        %v2204 = vpack.c.bf16 %v2154, %v2153
        %v2205 = vpack.c.bf16 %v2156, %v2155
        %v2206 = vpack.c.bf16 %v2158, %v2157
        %v2207 = vpack.c.bf16 %v2160, %v2159
        %v2208 = vpack.c.bf16 %v2162, %v2161
        %v2209 = vpack.c.bf16 %v2164, %v2163
        %v2210 = vpack.c.bf16 %v2166, %v2165
        %v2211 = vpack.c.bf16 %v2168, %v2167
        %v2212 = vpack.c.bf16 %v2170, %v2169
        %v2213 = vpack.c.bf16 %v2172, %v2171
        %v2214 = vpack.c.bf16 %v2174, %v2173
        %v2215 = vpack.c.bf16 %v2176, %v2175
        %v2216 = vpack.c.bf16 %v2178, %v2177
        %v2217 = vpack.c.bf16 %v2180, %v2179
        %v2218 = vpack.c.bf16 %v2182, %v2181
        %v2219 = vpack.c.bf16 %v2184, %v2183
        %v2220 = vpack.c.bf16 %v2186, %v2185
        %v2221 = vpack.c.bf16 %v2188, %v2187
        %v2222 = vpack.c.bf16 %v2190, %v2189
        %v2223 = vld [vmem:[%s10] sm:$0xf]
        %v2224 = vld [vmem:[%s10 + $0x4] sm:$0xf]
        %v2225 = vld [vmem:[%s10 + $0x8] sm:$0xf]
        %v2226 = vld [vmem:[%s10 + $0xc] sm:$0xf]
        %v2227 = vld [vmem:[%s10 + $0x10] sm:$0xf]
        %v2228 = vld [vmem:[%s10 + $0x14] sm:$0xf]
        %v2229 = vld [vmem:[%s10 + $0x18] sm:$0xf]
        %v2230 = vld [vmem:[%s10 + $0x1c] sm:$0xf]
        %v2231 = vld [vmem:[%s10 + $0x20] sm:$0xf]
        %v2232 = vld [vmem:[%s10 + $0x24] sm:$0xf]
        %v2233 = vld [vmem:[%s10 + $0x28] sm:$0xf]
        %v2234 = vld [vmem:[%s10 + $0x2c] sm:$0xf]
        %v2235 = vld [vmem:[%s10 + $0x30] sm:$0xf]
        %v2236 = vld [vmem:[%s10 + $0x34] sm:$0xf]
        %v2237 = vld [vmem:[%s10 + $0x38] sm:$0xf]
        %v2238 = vld [vmem:[%s10 + $0x3c] sm:$0xf]
        %v2239 = vld [vmem:[%s11] sm:$0x1]
        %v2241 = vperm.slane %v2239, 0
        %v2259 = vunpack.c.l.b16 %v2223
        %v2260 = vunpack.c.l.b16 %v2224
        %v2261 = vunpack.c.l.b16 %v2225
        %v2262 = vunpack.c.l.b16 %v2226
        %v2263 = vunpack.c.l.b16 %v2227
        %v2264 = vunpack.c.l.b16 %v2228
        %v2265 = vunpack.c.l.b16 %v2229
        %v2266 = vunpack.c.l.b16 %v2230
        %v2267 = vunpack.c.l.b16 %v2231
        %v2268 = vunpack.c.l.b16 %v2232
        %v2269 = vunpack.c.l.b16 %v2233
        %v2270 = vunpack.c.l.b16 %v2234
        %v2271 = vunpack.c.l.b16 %v2235
        %v2272 = vunpack.c.l.b16 %v2236
        %v2273 = vunpack.c.l.b16 %v2237
        %v2274 = vunpack.c.l.b16 %v2238
        %v2275 = vpack.c.b16 %v2260, %v2259
        %v2276 = vpack.c.b16 %v2262, %v2261
        %v2277 = vpack.c.b16 %v2264, %v2263
        %v2278 = vpack.c.b16 %v2266, %v2265
        %v2279 = vpack.c.b16 %v2268, %v2267
        %v2280 = vpack.c.b16 %v2270, %v2269
        %v2281 = vpack.c.b16 %v2272, %v2271
        %v2282 = vpack.c.b16 %v2274, %v2273
        %2291 = vmatpush.bf16.msra.mxu0 %v2282
        %2292 = vmatpush.bf16.msra.mxu0 %v2281
        %2293 = vmatpush.bf16.msra.mxu0 %v2280
        %2294 = vmatpush.bf16.msra.mxu0 %v2279
        %2295 = vmatpush.bf16.msra.mxu0 %v2278
        %2296 = vmatpush.bf16.msra.mxu0 %v2277
        %2297 = vmatpush.bf16.msra.mxu0 %v2276
        %2298 = vmatpush.bf16.msra.mxu0 %v2275
        %2299 = vmatmul.bf16.gmra.mxu0 %v2191
        %v2300 = vpop.f32.mrf.mxu0
        %v2301 = vadd.f32 %v2241, %v2300
        %v2302 = vpop.f32.mrf.mxu0
        %v2303 = vadd.f32 %v2241, %v2302
        %2304 = vmatmul.bf16.gmra.mxu0 %v2192
        %v2305 = vpop.f32.mrf.mxu0
        %v2306 = vadd.f32 %v2241, %v2305
        %v2307 = vpop.f32.mrf.mxu0
        %v2308 = vadd.f32 %v2241, %v2307
        %2309 = vmatmul.bf16.gmra.mxu0 %v2193
        %v2310 = vpop.f32.mrf.mxu0
        %v2311 = vadd.f32 %v2241, %v2310
        %v2312 = vpop.f32.mrf.mxu0
        %v2313 = vadd.f32 %v2241, %v2312
        %2314 = vmatmul.bf16.gmra.mxu0 %v2194
        %v2315 = vpop.f32.mrf.mxu0
        %v2316 = vadd.f32 %v2241, %v2315
        %v2317 = vpop.f32.mrf.mxu0
        %v2318 = vadd.f32 %v2241, %v2317
        %2319 = vmatmul.bf16.gmra.mxu0 %v2195
        %v2320 = vpop.f32.mrf.mxu0
        %v2321 = vadd.f32 %v2241, %v2320
        %v2322 = vpop.f32.mrf.mxu0
        %v2323 = vadd.f32 %v2241, %v2322
        %2324 = vmatmul.bf16.gmra.mxu0 %v2196
        %v2325 = vpop.f32.mrf.mxu0
        %v2326 = vadd.f32 %v2241, %v2325
        %v2327 = vpop.f32.mrf.mxu0
        %v2328 = vadd.f32 %v2241, %v2327
        %2329 = vmatmul.bf16.gmra.mxu0 %v2197
        %v2330 = vpop.f32.mrf.mxu0
        %v2331 = vadd.f32 %v2241, %v2330
        %v2332 = vpop.f32.mrf.mxu0
        %v2333 = vadd.f32 %v2241, %v2332
        %2334 = vmatmul.bf16.gmra.mxu0 %v2198
        %v2335 = vpop.f32.mrf.mxu0
        %v2336 = vadd.f32 %v2241, %v2335
        %v2337 = vpop.f32.mrf.mxu0
        %v2338 = vadd.f32 %v2241, %v2337
        %2339 = vmatmul.bf16.gmra.mxu0 %v2199
        %v2340 = vpop.f32.mrf.mxu0
        %v2341 = vadd.f32 %v2241, %v2340
        %v2342 = vpop.f32.mrf.mxu0
        %v2343 = vadd.f32 %v2241, %v2342
        %2344 = vmatmul.bf16.gmra.mxu0 %v2200
        %v2345 = vpop.f32.mrf.mxu0
        %v2346 = vadd.f32 %v2241, %v2345
        %v2347 = vpop.f32.mrf.mxu0
        %v2348 = vadd.f32 %v2241, %v2347
        %2349 = vmatmul.bf16.gmra.mxu0 %v2201
        %v2350 = vpop.f32.mrf.mxu0
        %v2351 = vadd.f32 %v2241, %v2350
        %v2352 = vpop.f32.mrf.mxu0
        %v2353 = vadd.f32 %v2241, %v2352
        %2354 = vmatmul.bf16.gmra.mxu0 %v2202
        %v2355 = vpop.f32.mrf.mxu0
        %v2356 = vadd.f32 %v2241, %v2355
        %v2357 = vpop.f32.mrf.mxu0
        %v2358 = vadd.f32 %v2241, %v2357
        %2359 = vmatmul.bf16.gmra.mxu0 %v2203
        %v2360 = vpop.f32.mrf.mxu0
        %v2361 = vadd.f32 %v2241, %v2360
        %v2362 = vpop.f32.mrf.mxu0
        %v2363 = vadd.f32 %v2241, %v2362
        %2364 = vmatmul.bf16.gmra.mxu0 %v2204
        %v2365 = vpop.f32.mrf.mxu0
        %v2366 = vadd.f32 %v2241, %v2365
        %v2367 = vpop.f32.mrf.mxu0
        %v2368 = vadd.f32 %v2241, %v2367
        %2369 = vmatmul.bf16.gmra.mxu0 %v2205
        %v2370 = vpop.f32.mrf.mxu0
        %v2371 = vadd.f32 %v2241, %v2370
        %v2372 = vpop.f32.mrf.mxu0
        %v2373 = vadd.f32 %v2241, %v2372
        %2374 = vmatmul.bf16.gmra.mxu0 %v2206
        %v2375 = vpop.f32.mrf.mxu0
        %v2376 = vadd.f32 %v2241, %v2375
        %v2377 = vpop.f32.mrf.mxu0
        %v2378 = vadd.f32 %v2241, %v2377
        %2379 = vmatmul.bf16.gmra.mxu0 %v2207
        %v2380 = vpop.f32.mrf.mxu0
        %v2381 = vadd.f32 %v2241, %v2380
        %v2382 = vpop.f32.mrf.mxu0
        %v2383 = vadd.f32 %v2241, %v2382
        %2384 = vmatmul.bf16.gmra.mxu0 %v2208
        %v2385 = vpop.f32.mrf.mxu0
        %v2386 = vadd.f32 %v2241, %v2385
        %v2387 = vpop.f32.mrf.mxu0
        %v2388 = vadd.f32 %v2241, %v2387
        %2389 = vmatmul.bf16.gmra.mxu0 %v2209
        %v2390 = vpop.f32.mrf.mxu0
        %v2391 = vadd.f32 %v2241, %v2390
        %v2392 = vpop.f32.mrf.mxu0
        %v2393 = vadd.f32 %v2241, %v2392
        %2394 = vmatmul.bf16.gmra.mxu0 %v2210
        %v2395 = vpop.f32.mrf.mxu0
        %v2396 = vadd.f32 %v2241, %v2395
        %v2397 = vpop.f32.mrf.mxu0
        %v2398 = vadd.f32 %v2241, %v2397
        %2399 = vmatmul.bf16.gmra.mxu0 %v2211
        %v2400 = vpop.f32.mrf.mxu0
        %v2401 = vadd.f32 %v2241, %v2400
        %v2402 = vpop.f32.mrf.mxu0
        %v2403 = vadd.f32 %v2241, %v2402
        %2404 = vmatmul.bf16.gmra.mxu0 %v2212
        %v2405 = vpop.f32.mrf.mxu0
        %v2406 = vadd.f32 %v2241, %v2405
        %v2407 = vpop.f32.mrf.mxu0
        %v2408 = vadd.f32 %v2241, %v2407
        %2409 = vmatmul.bf16.gmra.mxu0 %v2213
        %v2410 = vpop.f32.mrf.mxu0
        %v2411 = vadd.f32 %v2241, %v2410
        %v2412 = vpop.f32.mrf.mxu0
        %v2413 = vadd.f32 %v2241, %v2412
        %2414 = vmatmul.bf16.gmra.mxu0 %v2214
        %v2415 = vpop.f32.mrf.mxu0
        %v2416 = vadd.f32 %v2241, %v2415
        %v2417 = vpop.f32.mrf.mxu0
        %v2418 = vadd.f32 %v2241, %v2417
        %2419 = vmatmul.bf16.gmra.mxu0 %v2215
        %v2420 = vpop.f32.mrf.mxu0
        %v2421 = vadd.f32 %v2241, %v2420
        %v2422 = vpop.f32.mrf.mxu0
        %v2423 = vadd.f32 %v2241, %v2422
        %2424 = vmatmul.bf16.gmra.mxu0 %v2216
        %v2425 = vpop.f32.mrf.mxu0
        %v2426 = vadd.f32 %v2241, %v2425
        %v2427 = vpop.f32.mrf.mxu0
        %v2428 = vadd.f32 %v2241, %v2427
        %2429 = vmatmul.bf16.gmra.mxu0 %v2217
        %v2430 = vpop.f32.mrf.mxu0
        %v2431 = vadd.f32 %v2241, %v2430
        %v2432 = vpop.f32.mrf.mxu0
        %v2433 = vadd.f32 %v2241, %v2432
        %2434 = vmatmul.bf16.gmra.mxu0 %v2218
        %v2435 = vpop.f32.mrf.mxu0
        %v2436 = vadd.f32 %v2241, %v2435
        %v2437 = vpop.f32.mrf.mxu0
        %v2438 = vadd.f32 %v2241, %v2437
        %2439 = vmatmul.bf16.gmra.mxu0 %v2219
        %v2440 = vpop.f32.mrf.mxu0
        %v2441 = vadd.f32 %v2241, %v2440
        %v2442 = vpop.f32.mrf.mxu0
        %v2443 = vadd.f32 %v2241, %v2442
        %2444 = vmatmul.bf16.gmra.mxu0 %v2220
        %v2445 = vpop.f32.mrf.mxu0
        %v2446 = vadd.f32 %v2241, %v2445
        %v2447 = vpop.f32.mrf.mxu0
        %v2448 = vadd.f32 %v2241, %v2447
        %2449 = vmatmul.bf16.gmra.mxu0 %v2221
        %v2450 = vpop.f32.mrf.mxu0
        %v2451 = vadd.f32 %v2241, %v2450
        %v2452 = vpop.f32.mrf.mxu0
        %v2453 = vadd.f32 %v2241, %v2452
        %2454 = vmatmul.bf16.gmra.mxu0 %v2222
        %v2455 = vpop.f32.mrf.mxu0
        %v2456 = vadd.f32 %v2241, %v2455
        %v2457 = vpop.f32.mrf.mxu0
        %v2458 = vadd.f32 %v2241, %v2457
        %2459 = vdwg.mxu0
        %s2460 = sadd.s32 %s30, %s31
        %s2461 = sshra.s32 %s2460, 1
        %s2462 = sand.u32 %s2460, 1
        %s2463 = sshra.s32 %s2460, 1
        %s2464 = sand.u32 %s2460, 1
        %s2465 = smul.u32 %s2461, 4
        %s2466 = smul.u32 %s2465, 2
        %s2467 = sadd.s32 %s2466, %s2464
        %s2468 = scalar_lea.vmem %s2, %s2467
        %v2469 = vld [vmem:[%s2468] ss:$2 sm:$0xf]
        %v2470 = vlaneseq
        %v2471 = vshrl.u32 %v2470, 7
        %v2472 = vadd.s32 %v2471, 8
        %v2473 = vperm.slane %v2469, 0
        %v2474 = vperm.slane %v2469, 1
        %v2475 = vperm.slane %v2469, 2
        %v2476 = vperm.slane %v2469, 3
        %vm2477 = vcmp.eq.s32.totalorder %v2471, %v2473
        %vm2478 = vcmp.eq.s32.totalorder %v2471, %v2474
        %vm2479 = vcmp.eq.s32.totalorder %v2471, %v2475
        %vm2480 = vcmp.eq.s32.totalorder %v2471, %v2476
        %vm2481 = vcmp.eq.s32.totalorder %v2472, %v2473
        %vm2482 = vcmp.eq.s32.totalorder %v2472, %v2474
        %vm2483 = vcmp.eq.s32.totalorder %v2472, %v2475
        %vm2484 = vcmp.eq.s32.totalorder %v2472, %v2476
        %v2485 = vsel %vm2477, 1, 0
        %v2486 = vsel %vm2478, 1, 0
        %v2487 = vsel %vm2479, 1, 0
        %v2488 = vsel %vm2480, 1, 0
        %v2489 = vsel %vm2481, 1, 0
        %v2490 = vsel %vm2482, 1, 0
        %v2491 = vsel %vm2483, 1, 0
        %v2492 = vsel %vm2484, 1, 0
        %v2493 = vcvt.s32.f32 %v2485
        %v2494 = vcvt.s32.f32 %v2486
        %v2495 = vcvt.s32.f32 %v2487
        %v2496 = vcvt.s32.f32 %v2488
        %v2497 = vcvt.s32.f32 %v2489
        %v2498 = vcvt.s32.f32 %v2490
        %v2499 = vcvt.s32.f32 %v2491
        %v2500 = vcvt.s32.f32 %v2492
        %v2501 = vpack.c.bf16 %v2497, %v2493
        %v2502 = vpack.c.bf16 %v2498, %v2494
        %v2503 = vpack.c.bf16 %v2499, %v2495
        %v2504 = vpack.c.bf16 %v2500, %v2496
        %v2505 = vld [vmem:[%s445] sm:$0xff]
        %v2506 = vld [vmem:[%s445 + $0x8] sm:$0xff]
        %v2507 = vpack.c.bf16 %v2303, %v2301
        %v2508 = vpack.c.bf16 %v2308, %v2306
        %v2509 = vpack.c.bf16 %v2313, %v2311
        %v2510 = vpack.c.bf16 %v2318, %v2316
        %v2511 = vpack.c.bf16 %v2323, %v2321
        %v2512 = vpack.c.bf16 %v2328, %v2326
        %v2513 = vpack.c.bf16 %v2333, %v2331
        %v2514 = vpack.c.bf16 %v2338, %v2336
        %v2515 = vpack.c.bf16 %v2343, %v2341
        %v2516 = vpack.c.bf16 %v2348, %v2346
        %v2517 = vpack.c.bf16 %v2353, %v2351
        %v2518 = vpack.c.bf16 %v2358, %v2356
        %v2519 = vpack.c.bf16 %v2363, %v2361
        %v2520 = vpack.c.bf16 %v2368, %v2366
        %v2521 = vpack.c.bf16 %v2373, %v2371
        %v2522 = vpack.c.bf16 %v2378, %v2376
        %v2523 = vpack.c.bf16 %v2383, %v2381
        %v2524 = vpack.c.bf16 %v2388, %v2386
        %v2525 = vpack.c.bf16 %v2393, %v2391
        %v2526 = vpack.c.bf16 %v2398, %v2396
        %v2527 = vpack.c.bf16 %v2403, %v2401
        %v2528 = vpack.c.bf16 %v2408, %v2406
        %v2529 = vpack.c.bf16 %v2413, %v2411
        %v2530 = vpack.c.bf16 %v2418, %v2416
        %v2531 = vpack.c.bf16 %v2423, %v2421
        %v2532 = vpack.c.bf16 %v2428, %v2426
        %v2533 = vpack.c.bf16 %v2433, %v2431
        %v2534 = vpack.c.bf16 %v2438, %v2436
        %v2535 = vpack.c.bf16 %v2443, %v2441
        %v2536 = vpack.c.bf16 %v2448, %v2446
        %v2537 = vpack.c.bf16 %v2453, %v2451
        %v2538 = vpack.c.bf16 %v2458, %v2456
        %2539 = vmatpush.bf16.msra.mxu0 %v2514
        %2540 = vmatpush.bf16.msra.mxu0 %v2513
        %2541 = vmatpush.bf16.msra.mxu0 %v2512
        %2542 = vmatpush.bf16.msra.mxu0 %v2511
        %2543 = vmatpush.bf16.msra.mxu0 %v2510
        %2544 = vmatpush.bf16.msra.mxu0 %v2509
        %2545 = vmatpush.bf16.msra.mxu0 %v2508
        %2546 = vmatpush.bf16.msra.mxu0 %v2507
        %2547 = vmatmul.bf16.gmra.mxu0 %v2501
        %v2548 = vpop.f32.mrf.mxu0
        %v2549 = vadd.f32 0.0, %v2548
        %v2550 = vpop.f32.mrf.mxu0
        %v2551 = vadd.f32 0.0, %v2550
        %2552 = vdwg.mxu0
        %2553 = vmatpush.bf16.msra.mxu0 %v2522
        %2554 = vmatpush.bf16.msra.mxu0 %v2521
        %2555 = vmatpush.bf16.msra.mxu0 %v2520
        %2556 = vmatpush.bf16.msra.mxu0 %v2519
        %2557 = vmatpush.bf16.msra.mxu0 %v2518
        %2558 = vmatpush.bf16.msra.mxu0 %v2517
        %2559 = vmatpush.bf16.msra.mxu0 %v2516
        %2560 = vmatpush.bf16.msra.mxu0 %v2515
        %2561 = vmatmul.bf16.gmra.mxu0 %v2502
        %v2562 = vpop.f32.mrf.mxu0
        %v2563 = vadd.f32 %v2549, %v2562
        %v2564 = vpop.f32.mrf.mxu0
        %v2565 = vadd.f32 %v2551, %v2564
        %2566 = vdwg.mxu0
        %2567 = vmatpush.bf16.msra.mxu0 %v2530
        %2568 = vmatpush.bf16.msra.mxu0 %v2529
        %2569 = vmatpush.bf16.msra.mxu0 %v2528
        %2570 = vmatpush.bf16.msra.mxu0 %v2527
        %2571 = vmatpush.bf16.msra.mxu0 %v2526
        %2572 = vmatpush.bf16.msra.mxu0 %v2525
        %2573 = vmatpush.bf16.msra.mxu0 %v2524
        %2574 = vmatpush.bf16.msra.mxu0 %v2523
        %2575 = vmatmul.bf16.gmra.mxu0 %v2503
        %v2576 = vpop.f32.mrf.mxu0
        %v2577 = vadd.f32 %v2563, %v2576
        %v2578 = vpop.f32.mrf.mxu0
        %v2579 = vadd.f32 %v2565, %v2578
        %2580 = vdwg.mxu0
        %2581 = vmatpush.bf16.msra.mxu0 %v2538
        %2582 = vmatpush.bf16.msra.mxu0 %v2537
        %2583 = vmatpush.bf16.msra.mxu0 %v2536
        %2584 = vmatpush.bf16.msra.mxu0 %v2535
        %2585 = vmatpush.bf16.msra.mxu0 %v2534
        %2586 = vmatpush.bf16.msra.mxu0 %v2533
        %2587 = vmatpush.bf16.msra.mxu0 %v2532
        %2588 = vmatpush.bf16.msra.mxu0 %v2531
        %2589 = vmatmul.bf16.gmra.mxu0 %v2504
        %v2590 = vpop.f32.mrf.mxu0
        %v2591 = vadd.f32 %v2577, %v2590
        %v2592 = vpop.f32.mrf.mxu0
        %v2593 = vadd.f32 %v2579, %v2592
        %2594 = vdwg.mxu0
        %v2595 = vadd.f32 %v2505, %v2591
        %v2596 = vadd.f32 %v2506, %v2593
        %2597 = vst [vmem:[%s445] sm:$0xff] %v2595
        %2598 = vst [vmem:[%s445 + $0x8] sm:$0xff] %v2596
        %s2599 = sand.u32 %s312, 1
        %s2600 = scalar_lea.sflag [#allocation3], %s2599
        %s2601 = sand.u32 %s312, 1
        %s2602 = smul.addr %s2601, 16
        %s2603 = scalar_lea.vmem [#allocation2], %s2602
        // Predicated region
        $region73: #{tpu_custom_call.1} parent=67 // pred_check
          %p2604 = pneg %p322
        $region74: #{tpu_custom_call.1} parent=67 // pred_check_branch
          %2606 = sbr.rel (%p2604) target = $region76
        $region75: #{tpu_custom_call.1} parent=67 // pred_region
          %2608 = vsyncadd %s2600, 0
          %s2609 = smul.addr %s30, 2
          %s2610 = smul.addr %s2609, 8
          %s2611 = scalar_lea.hbm %s12, %s2610
          %s2612 = sshll.u32 %s2603, 4
          %s2613 = int_to_ptr.vmem [resolvable:$true] %s2612
          %s2614 = sshll.u32 %s2611, 4
          %s2615 = int_to_ptr.hbm [resolvable:$true] %s2614
          %2620 = dma.vmem_to_hbm [thread:$0]  %s2613, 256, %s2615, %s2600, 128, 128, 8
        $region76: #{tpu_custom_call.1} parent=67 // pred_fallthru
          _
      $region68: #{tpu_custom_call.1} parent=5 // pred_fallthru
        _
      %p2621 = scmp.le.s32.totalorder 2, %s21
      // Predicated region
      $region77: #{tpu_custom_call.1} parent=5 // pred_check
        %p2622 = pneg %p2621
      $region78: #{tpu_custom_call.1} parent=5 // pred_check_branch
        %2624 = sbr.rel (%p2622) target = $region80
      $region79: #{tpu_custom_call.1} parent=5 // pred_region
        %s2625 = ssub.s32 %s21, 2
        // Predicated region
        $region81: #{tpu_custom_call.1} parent=79 // pred_check
          %p2626 = pneg %p328
        $region82: #{tpu_custom_call.1} parent=79 // pred_check_branch
          %2628 = sbr.rel (%p2626) target = $region84
        $region83: #{tpu_custom_call.1} parent=79 // pred_region
          %s2629 = sand.u32 %s313, 1
          %s2630 = scalar_lea.sflag [#allocation3], %s2629
          %s2631 = sand.u32 %s313, 1
          %s2632 = smul.addr %s2631, 16
          %s2633 = scalar_lea.vmem [#allocation2], %s2632
          %2635 = dma.done %s2630, 256
        $region84: #{tpu_custom_call.1} parent=79 // pred_fallthru
          _
      $region80: #{tpu_custom_call.1} parent=5 // pred_fallthru
        _
    $region6: #{tpu_custom_call.1} parent=1 // loop_footer
      %s25 = sadd.s32 1, %s21
    $region7: #{tpu_custom_call.1} parent=1 // loop_footer_branch
      %20 = sbr.rel target = $region3
    $region8: #{tpu_custom_call.1} parent=1 // loop_exit
      _
    %2636 = vsyncpa [#allocation3], 1
    %s2637 = scalar_lea.sflag [#allocation3], 1
    %2638 = vsyncpa %s2637, 1

</llo_original>
